<compile_context>
chip_gen: v6e
topology: v6e:2x2x1
jax: 0.10.0
libtpu: 0.0.40
codegen_flags: <defaults>
</compile_context>

<pallas_src>
import functools

import jax
import jax.numpy as jnp
from jax.experimental import pallas as pl
from jax.experimental.pallas import tpu as pltpu


# ----------------------------------------------------------------------------
# In-kernel helpers
# ----------------------------------------------------------------------------
def _layernorm(x, gamma, beta, eps=1e-5):
    # PyTorch nn.LayerNorm over the last dim (biased variance, eps=1e-5).
    # Single-pass statistics: var = E[x^2] - E[x]^2 (one fewer XLU reduce).
    mean = jnp.mean(x, axis=-1, keepdims=True)
    mean_sq = jnp.mean(x * x, axis=-1, keepdims=True)
    var = jnp.maximum(mean_sq - mean * mean, 0.0)
    return (x - mean) * jax.lax.rsqrt(var + eps) * gamma + beta


def _gelu(x):
    # TODO(synk): PyTorch nn.GELU() default is exact erf GELU; using the tanh
    # approximation (max abs err ~1e-3) for a safe Mosaic lowering.
    return jax.nn.gelu(x, approximate=True)


# ----------------------------------------------------------------------------
# Fully fused kernel: patch-embed -> depth x (token-mix + channel-mix)
#                      -> LayerNorm -> token-mean pooling -> fc head.
# Single invocation, no grid; the whole batch lives in one (B*N, D) slab.
# ----------------------------------------------------------------------------
def qnet_mixer_wod_kernel(depth,
                          patches_ref,              # (B*N, Ppad)       bf16
                          emb_w_ref, emb_b_ref,     # (Ppad, D) bf16, (1, D) f32
                          ln_t_g_ref, ln_t_b_ref,   # (depth, 1, D)     f32
                          wt1_ref, bt1_ref,         # (depth, B*Dt, B*N) bf16, (depth, B*Dt, D) f32
                          wt2_ref, bt2_ref,         # (depth, B*N, B*Dt) bf16, (depth, B*N, D) f32
                          ln_c_g_ref, ln_c_b_ref,   # (depth, 1, D)     f32
                          wc1_ref, bc1_ref,         # (depth, D, Dc) bf16, (depth, 1, Dc) f32
                          wc2_ref, bc2_ref,         # (depth, Dc, D) bf16, (depth, 1, D) f32
                          fln_g_ref, fln_b_ref,     # (1, D)            f32
                          pool_ref,                 # (B, B*N)          f32
                          fc_w_ref, fc_b_ref,       # (D, Cpad) bf16, (1, Cpad) f32
                          out_ref):                 # (B, Cpad)         f32
    mxu = jnp.bfloat16

    # Patch embedding for the whole batch: (B*N, Ppad) @ (Ppad, D) -> (B*N, D),
    # bf16 operands, f32 accumulation.
    x = jnp.dot(patches_ref[...], emb_w_ref[...],
                preferred_element_type=jnp.float32) + emb_b_ref[...]

    # depth is small and static -> keep the unroll (LLO scheduler visibility).
    # TODO(synk): switch to lax.fori_loop + dynamic ref[d] if depth grows > ~4
    # to bound vreg live ranges.
    for d in range(depth):
        # --- token mixing (Conv1d k=1 over tokens) as ONE block-diag matmul ---
        u = _layernorm(x, ln_t_g_ref[d], ln_t_b_ref[d]).astype(mxu)      # (B*N, D)
        t = jnp.dot(wt1_ref[d], u,
                    preferred_element_type=jnp.float32) + bt1_ref[d]     # (B*Dt, D)
        t = _gelu(t).astype(mxu)
        t = jnp.dot(wt2_ref[d], t,
                    preferred_element_type=jnp.float32) + bt2_ref[d]     # (B*N, D)
        x = x + t

        # --- channel mixing (Linear over features), PreNormResidual ---
        u = _layernorm(x, ln_c_g_ref[d], ln_c_b_ref[d]).astype(mxu)      # (B*N, D)
        c = jnp.dot(u, wc1_ref[d],
                    preferred_element_type=jnp.float32) + bc1_ref[d]     # (B*N, Dc)
        c = _gelu(c).astype(mxu)
        c = jnp.dot(c, wc2_ref[d],
                    preferred_element_type=jnp.float32) + bc2_ref[d]     # (B*N, D)
        x = x + c

    # Final LayerNorm -> per-batch token mean via pooling matmul -> fc head.
    x = _layernorm(x, fln_g_ref[...], fln_b_ref[...])                    # (B*N, D)
    feats = jnp.dot(pool_ref[...], x,
                    preferred_element_type=jnp.float32)                  # (B, D) f32
    out_ref[...] = (jnp.dot(feats.astype(mxu), fc_w_ref[...],
                            preferred_element_type=jnp.float32)
                    + fc_b_ref[...])                                     # (B, Cpad)


# ----------------------------------------------------------------------------
# JAX glue
# ----------------------------------------------------------------------------
def to_patches(x, ps):
    # 'b c (h p1) (w p2) -> b (h w) (p1 p2 c)'
    B, C, H, W = x.shape
    h, w = H // ps, W // ps
    x = x.reshape(B, C, h, ps, w, ps)
    x = x.transpose(0, 2, 4, 3, 5, 1)          # b h w p1 p2 c
    return x.reshape(B, h * w, ps * ps * C)


def _round_up(x, m):
    return ((x + m - 1) // m) * m


def prepare_fused_params(params, fc_params, B, N):
    """One-time (init-time) weight fusion for the Pallas kernel.

    Builds block-diagonal token-mix weights, pre-broadcast biases, the token
    pooling matrix, the lane-padded patch-embed / fc head, and casts all MXU
    operands to bfloat16.  Do NOT rebuild these per forward pass.
    """
    depth, Dt, _ = params["wt1"].shape
    P, D = params["emb_w"].shape
    nc = fc_params["w"].shape[1]
    Ppad = _round_up(max(P, 128), 128)
    Cpad = _round_up(max(nc, 128), 128)

    def block_diag(w):
        # (depth, R, C) -> (depth, B*R, B*C): batch-shared weight on diagonal.
        d_, R, C = w.shape
        eye = jnp.eye(B, dtype=w.dtype)
        return jnp.einsum("ij,drc->dirjc", eye, w).reshape(d_, B * R, B * C)

    # Block-diagonal token-mix weights (weights are batch-shared).
    wt1_bd = block_diag(params["wt1"]).astype(jnp.bfloat16)        # (depth, B*Dt, B*N)
    wt2_bd = block_diag(params["wt2"]).astype(jnp.bfloat16)        # (depth, B*N, B*Dt)
    # Column-vector biases tiled over the batch and pre-broadcast to lane width.
    bt1_rep = jnp.broadcast_to(jnp.tile(params["bt1"], (1, B, 1)),
                               (depth, B * Dt, D)).astype(jnp.float32)
    bt2_rep = jnp.broadcast_to(jnp.tile(params["bt2"], (1, B, 1)),
                               (depth, B * N, D)).astype(jnp.float32)

    # Lane-padded patch-embed weight (zero rows are inert in the contraction).
    emb_w = jnp.zeros((Ppad, D), jnp.float32).at[:P, :].set(params["emb_w"])

    # Token pooling matrix: mean over each batch's N tokens, (B, B*N).
    pool = jnp.kron(jnp.eye(B, dtype=jnp.float32),
                    jnp.full((1, N), 1.0 / N, jnp.float32))

    # Lane-dense fc head (zero-padded to Cpad lanes -> unmasked store).
    fc_w = jnp.zeros((D, Cpad), jnp.float32).at[:, :nc].set(fc_params["w"])
    fc_b = jnp.zeros((1, Cpad), jnp.float32).at[:, :nc].set(fc_params["b"])

    fused = dict(
        emb_w=emb_w.astype(jnp.bfloat16),
        emb_b=params["emb_b"].astype(jnp.float32),
        ln_t_g=params["ln_t_g"], ln_t_b=params["ln_t_b"],
        wt1_bd=wt1_bd, bt1_rep=bt1_rep, wt2_bd=wt2_bd, bt2_rep=bt2_rep,
        ln_c_g=params["ln_c_g"], ln_c_b=params["ln_c_b"],
        wc1=params["wc1"].astype(jnp.bfloat16), bc1=params["bc1"],
        wc2=params["wc2"].astype(jnp.bfloat16), bc2=params["bc2"],
        fln_g=params["fln_g"], fln_b=params["fln_b"],
        pool=pool,
        fc_w=fc_w.astype(jnp.bfloat16), fc_b=fc_b,
    )
    meta = dict(depth=depth, B=B, N=N, P=P, Ppad=Ppad, nc=nc, Cpad=Cpad)
    return fused, meta


def qnet_mixer_wod_forward(i_img, fused, meta, patch_size):
    # i.view(-1, C, H, W)
    i_img = i_img.reshape(-1, i_img.shape[-3], i_img.shape[-2], i_img.shape[-1])
    patches = to_patches(i_img, patch_size)                  # (B, N, P)
    B, N, P = patches.shape
    depth, Ppad = meta["depth"], meta["Ppad"]
    nc, Cpad = meta["nc"], meta["Cpad"]

    # Flatten batch+tokens into one sublane-dense slab; lane-pad the patch dim
    # so the input load is an unmasked (8, 128) tile; bf16 MXU operand.
    patches2d = patches.reshape(B * N, P)
    patches2d = jnp.pad(patches2d, ((0, 0), (0, Ppad - P))).astype(jnp.bfloat16)

    args = (patches2d, fused["emb_w"], fused["emb_b"],
            fused["ln_t_g"], fused["ln_t_b"],
            fused["wt1_bd"], fused["bt1_rep"], fused["wt2_bd"], fused["bt2_rep"],
            fused["ln_c_g"], fused["ln_c_b"],
            fused["wc1"], fused["bc1"], fused["wc2"], fused["bc2"],
            fused["fln_g"], fused["fln_b"],
            fused["pool"], fused["fc_w"], fused["fc_b"])

    vmem = pl.BlockSpec(memory_space=pltpu.MemorySpace.VMEM)
    out = pl.pallas_call(
        functools.partial(qnet_mixer_wod_kernel, depth),
        out_shape=jax.ShapeDtypeStruct((B, Cpad), jnp.float32),
        in_specs=[vmem] * len(args),
        out_specs=vmem,
    )(*args)
    return out[:, :nc]                                       # (B, num_classes)


# ----------------------------------------------------------------------------
# Deterministic parameter init (synthetic; shapes follow MLPMixer/QNet_MixerWOD)
# ----------------------------------------------------------------------------
def init_mixer_params(key, N, P, D, depth):
    Dt = 4 * N            # token-mix hidden (expansion_factor = 4)
    Dc = D // 2           # channel-mix hidden (expansion_factor_token = 0.5)
    ks = jax.random.split(key, 10)

    def w(k, shape, scale=0.05):
        return (scale * jax.random.normal(k, shape)).astype(jnp.float32)

    return dict(
        emb_w=w(ks[0], (P, D)),
        emb_b=w(ks[1], (1, D)),
        ln_t_g=jnp.ones((depth, 1, D), jnp.float32),
        ln_t_b=jnp.zeros((depth, 1, D), jnp.float32),
        wt1=w(ks[2], (depth, Dt, N)),          # Conv1d(N -> 4N, k=1) weight
        bt1=w(ks[3], (depth, Dt, 1)),
        wt2=w(ks[4], (depth, N, Dt)),          # Conv1d(4N -> N, k=1) weight
        bt2=w(ks[5], (depth, N, 1)),
        ln_c_g=jnp.ones((depth, 1, D), jnp.float32),
        ln_c_b=jnp.zeros((depth, 1, D), jnp.float32),
        wc1=w(ks[6], (depth, D, Dc)),          # Linear(D -> D/2) (in, out)
        bc1=w(ks[7], (depth, 1, Dc)),
        wc2=w(ks[8], (depth, Dc, D)),          # Linear(D/2 -> D)
        bc2=w(ks[9], (depth, 1, D)),
        fln_g=jnp.ones((1, D), jnp.float32),
        fln_b=jnp.zeros((1, D), jnp.float32),
    )


def init_fc_params(key, D, num_classes):
    k1, k2 = jax.random.split(key)

    def w(k, shape, scale=0.05):
        return (scale * jax.random.normal(k, shape)).astype(jnp.float32)

    return dict(w=w(k1, (D, num_classes)), b=w(k2, (1, num_classes)))


# ----------------------------------------------------------------------------
if __name__ == "__main__":
    # Small shapes consistent with the module: image 16x16, channels=1,
    # patch_size=8 -> 4 tokens of 64 dims each; dim=128 (module default,
    # lane-dense), depth=2, num_classes=1.  B*N = 8 rows = one vreg sublane set.
    B, C, H, W, PS = 2, 1, 16, 16, 8
    D, DEPTH, NUM_CLASSES = 128, 2, 1
    N = (H // PS) * (W // PS)
    P = PS * PS * C

    key = jax.random.PRNGKey(0)
    ki, kp, kf = jax.random.split(key, 3)

    i_img = jax.random.normal(ki, (B, C, H, W), jnp.float32)
    params = init_mixer_params(kp, N, P, D, DEPTH)
    fc = init_fc_params(kf, D, NUM_CLASSES)

    # One-time weight fusion (hoisted out of the per-call forward path).
    fused, meta = prepare_fused_params(params, fc, B, N)

    out = qnet_mixer_wod_forward(i_img, fused, meta, patch_size=PS)
    out = jax.block_until_ready(out)
    assert out.shape == (B, NUM_CLASSES), out.shape
    assert jnp.all(jnp.isfinite(out))
    print("KERNEL_OK")
</pallas_src>

<mosaic_0001>
module attributes {stable_mosaic.version = 11 : i64} {
  func.func @qnet_mixer_wod_kernel(%arg0: memref<8x128xbf16, #tpu.memory_space<vmem>>, %arg1: memref<128x128xbf16, #tpu.memory_space<vmem>>, %arg2: memref<1x128xf32, #tpu.memory_space<vmem>>, %arg3: memref<2x1x128xf32, #tpu.memory_space<vmem>>, %arg4: memref<2x1x128xf32, #tpu.memory_space<vmem>>, %arg5: memref<2x32x8xbf16, #tpu.memory_space<vmem>>, %arg6: memref<2x32x128xf32, #tpu.memory_space<vmem>>, %arg7: memref<2x8x32xbf16, #tpu.memory_space<vmem>>, %arg8: memref<2x8x128xf32, #tpu.memory_space<vmem>>, %arg9: memref<2x1x128xf32, #tpu.memory_space<vmem>>, %arg10: memref<2x1x128xf32, #tpu.memory_space<vmem>>, %arg11: memref<2x128x64xbf16, #tpu.memory_space<vmem>>, %arg12: memref<2x1x64xf32, #tpu.memory_space<vmem>>, %arg13: memref<2x64x128xbf16, #tpu.memory_space<vmem>>, %arg14: memref<2x1x128xf32, #tpu.memory_space<vmem>>, %arg15: memref<1x128xf32, #tpu.memory_space<vmem>>, %arg16: memref<1x128xf32, #tpu.memory_space<vmem>>, %arg17: memref<2x8xf32, #tpu.memory_space<vmem>>, %arg18: memref<128x128xbf16, #tpu.memory_space<vmem>>, %arg19: memref<1x128xf32, #tpu.memory_space<vmem>>, %arg20: memref<2x128xf32, #tpu.memory_space<vmem>>) attributes {dimension_semantics = [], scalar_prefetch = 0 : i64, scratch_operands = 0 : i64, tpu.core_type = #tpu.core_type<tc>} {
    %c0 = arith.constant 0 : index
    %c0_0 = arith.constant 0 : index
    %0 = vector.load %arg0[%c0, %c0_0] : memref<8x128xbf16, #tpu.memory_space<vmem>>, vector<8x128xbf16>
    %c0_1 = arith.constant 0 : index
    %c0_2 = arith.constant 0 : index
    %1 = vector.load %arg1[%c0_1, %c0_2] : memref<128x128xbf16, #tpu.memory_space<vmem>>, vector<128x128xbf16>
    %cst = arith.constant dense<0.000000e+00> : vector<8x128xf32>
    %2 = tpu.matmul %0, %1, %cst {dimension_numbers = #tpu.dot_dimension_numbers<[1], [0], [0], [1], [0, 0, 1, 1], [], []>} : vector<8x128xbf16>, vector<128x128xbf16>, vector<8x128xf32> -> vector<8x128xf32>
    %c0_3 = arith.constant 0 : index
    %c0_4 = arith.constant 0 : index
    %3 = vector.load %arg2[%c0_3, %c0_4] : memref<1x128xf32, #tpu.memory_space<vmem>>, vector<1x128xf32>
    %4 = vector.broadcast %3 : vector<1x128xf32> to vector<8x128xf32>
    %5 = arith.addf %2, %4 : vector<8x128xf32>
    %c0_5 = arith.constant 0 : index
    %c0_6 = arith.constant 0 : index
    %c0_7 = arith.constant 0 : index
    %6 = vector.load %arg3[%c0_5, %c0_6, %c0_7] : memref<2x1x128xf32, #tpu.memory_space<vmem>>, vector<1x1x128xf32>
    %7 = vector.shape_cast %6 : vector<1x1x128xf32> to vector<1x128xf32>
    %c0_8 = arith.constant 0 : index
    %c0_9 = arith.constant 0 : index
    %c0_10 = arith.constant 0 : index
    %8 = vector.load %arg4[%c0_8, %c0_9, %c0_10] : memref<2x1x128xf32, #tpu.memory_space<vmem>>, vector<1x1x128xf32>
    %9 = vector.shape_cast %8 : vector<1x1x128xf32> to vector<1x128xf32>
    %cst_11 = arith.constant dense<0.000000e+00> : vector<8xf32>
    %10 = vector.multi_reduction <add>, %5, %cst_11 [1] : vector<8x128xf32> to vector<8xf32>
    %11 = vector.shape_cast %10 : vector<8xf32> to vector<8x1xf32>
    %cst_12 = arith.constant 1.280000e+02 : f32
    %12 = vector.broadcast %cst_12 : f32 to vector<8x1xf32>
    %13 = arith.divf %11, %12 : vector<8x1xf32>
    %14 = arith.mulf %5, %5 : vector<8x128xf32>
    %cst_13 = arith.constant dense<0.000000e+00> : vector<8xf32>
    %15 = vector.multi_reduction <add>, %14, %cst_13 [1] : vector<8x128xf32> to vector<8xf32>
    %16 = vector.shape_cast %15 : vector<8xf32> to vector<8x1xf32>
    %cst_14 = arith.constant 1.280000e+02 : f32
    %17 = vector.broadcast %cst_14 : f32 to vector<8x1xf32>
    %18 = arith.divf %16, %17 : vector<8x1xf32>
    %19 = arith.mulf %13, %13 : vector<8x1xf32>
    %20 = arith.subf %18, %19 : vector<8x1xf32>
    %cst_15 = arith.constant 0.000000e+00 : f32
    %21 = vector.broadcast %cst_15 : f32 to vector<8x1xf32>
    %22 = arith.maximumf %20, %21 : vector<8x1xf32>
    %23 = vector.broadcast %13 : vector<8x1xf32> to vector<8x128xf32>
    %24 = arith.subf %5, %23 : vector<8x128xf32>
    %cst_16 = arith.constant 9.99999974E-6 : f32
    %25 = vector.broadcast %cst_16 : f32 to vector<8x1xf32>
    %26 = arith.addf %22, %25 : vector<8x1xf32>
    %27 = math.rsqrt %26 : vector<8x1xf32>
    %28 = vector.broadcast %27 : vector<8x1xf32> to vector<8x128xf32>
    %29 = arith.mulf %24, %28 : vector<8x128xf32>
    %30 = vector.broadcast %7 : vector<1x128xf32> to vector<8x128xf32>
    %31 = arith.mulf %29, %30 : vector<8x128xf32>
    %32 = vector.broadcast %9 : vector<1x128xf32> to vector<8x128xf32>
    %33 = arith.addf %31, %32 : vector<8x128xf32>
    %34 = arith.truncf %33 : vector<8x128xf32> to vector<8x128xbf16>
    %c0_17 = arith.constant 0 : index
    %c0_18 = arith.constant 0 : index
    %c0_19 = arith.constant 0 : index
    %35 = vector.load %arg5[%c0_17, %c0_18, %c0_19] : memref<2x32x8xbf16, #tpu.memory_space<vmem>>, vector<1x32x8xbf16>
    %36 = vector.shape_cast %35 : vector<1x32x8xbf16> to vector<32x8xbf16>
    %cst_20 = arith.constant dense<0.000000e+00> : vector<32x128xf32>
    %37 = tpu.matmul %36, %34, %cst_20 {dimension_numbers = #tpu.dot_dimension_numbers<[1], [0], [0], [1], [0, 0, 1, 1], [], []>} : vector<32x8xbf16>, vector<8x128xbf16>, vector<32x128xf32> -> vector<32x128xf32>
    %c0_21 = arith.constant 0 : index
    %c0_22 = arith.constant 0 : index
    %c0_23 = arith.constant 0 : index
    %38 = vector.load %arg6[%c0_21, %c0_22, %c0_23] : memref<2x32x128xf32, #tpu.memory_space<vmem>>, vector<1x32x128xf32>
    %39 = vector.shape_cast %38 : vector<1x32x128xf32> to vector<32x128xf32>
    %40 = arith.addf %37, %39 : vector<32x128xf32>
    %41 = arith.mulf %40, %40 : vector<32x128xf32>
    %42 = arith.mulf %40, %41 : vector<32x128xf32>
    %cst_24 = arith.constant 4.471500e-02 : f32
    %43 = vector.broadcast %cst_24 : f32 to vector<32x128xf32>
    %44 = arith.mulf %43, %42 : vector<32x128xf32>
    %45 = arith.addf %40, %44 : vector<32x128xf32>
    %cst_25 = arith.constant 0.797884583 : f32
    %46 = vector.broadcast %cst_25 : f32 to vector<32x128xf32>
    %47 = arith.mulf %46, %45 : vector<32x128xf32>
    %48 = math.tanh %47 : vector<32x128xf32>
    %cst_26 = arith.constant 1.000000e+00 : f32
    %49 = vector.broadcast %cst_26 : f32 to vector<32x128xf32>
    %50 = arith.addf %49, %48 : vector<32x128xf32>
    %cst_27 = arith.constant 5.000000e-01 : f32
    %51 = vector.broadcast %cst_27 : f32 to vector<32x128xf32>
    %52 = arith.mulf %51, %50 : vector<32x128xf32>
    %53 = arith.mulf %40, %52 : vector<32x128xf32>
    %54 = arith.truncf %53 : vector<32x128xf32> to vector<32x128xbf16>
    %c0_28 = arith.constant 0 : index
    %c0_29 = arith.constant 0 : index
    %c0_30 = arith.constant 0 : index
    %55 = vector.load %arg7[%c0_28, %c0_29, %c0_30] : memref<2x8x32xbf16, #tpu.memory_space<vmem>>, vector<1x8x32xbf16>
    %56 = vector.shape_cast %55 : vector<1x8x32xbf16> to vector<8x32xbf16>
    %cst_31 = arith.constant dense<0.000000e+00> : vector<8x128xf32>
    %57 = tpu.matmul %56, %54, %cst_31 {dimension_numbers = #tpu.dot_dimension_numbers<[1], [0], [0], [1], [0, 0, 1, 1], [], []>} : vector<8x32xbf16>, vector<32x128xbf16>, vector<8x128xf32> -> vector<8x128xf32>
    %c0_32 = arith.constant 0 : index
    %c0_33 = arith.constant 0 : index
    %c0_34 = arith.constant 0 : index
    %58 = vector.load %arg8[%c0_32, %c0_33, %c0_34] : memref<2x8x128xf32, #tpu.memory_space<vmem>>, vector<1x8x128xf32>
    %59 = vector.shape_cast %58 : vector<1x8x128xf32> to vector<8x128xf32>
    %60 = arith.addf %57, %59 : vector<8x128xf32>
    %61 = arith.addf %5, %60 : vector<8x128xf32>
    %c0_35 = arith.constant 0 : index
    %c0_36 = arith.constant 0 : index
    %c0_37 = arith.constant 0 : index
    %62 = vector.load %arg9[%c0_35, %c0_36, %c0_37] : memref<2x1x128xf32, #tpu.memory_space<vmem>>, vector<1x1x128xf32>
    %63 = vector.shape_cast %62 : vector<1x1x128xf32> to vector<1x128xf32>
    %c0_38 = arith.constant 0 : index
    %c0_39 = arith.constant 0 : index
    %c0_40 = arith.constant 0 : index
    %64 = vector.load %arg10[%c0_38, %c0_39, %c0_40] : memref<2x1x128xf32, #tpu.memory_space<vmem>>, vector<1x1x128xf32>
    %65 = vector.shape_cast %64 : vector<1x1x128xf32> to vector<1x128xf32>
    %cst_41 = arith.constant dense<0.000000e+00> : vector<8xf32>
    %66 = vector.multi_reduction <add>, %61, %cst_41 [1] : vector<8x128xf32> to vector<8xf32>
    %67 = vector.shape_cast %66 : vector<8xf32> to vector<8x1xf32>
    %cst_42 = arith.constant 1.280000e+02 : f32
    %68 = vector.broadcast %cst_42 : f32 to vector<8x1xf32>
    %69 = arith.divf %67, %68 : vector<8x1xf32>
    %70 = arith.mulf %61, %61 : vector<8x128xf32>
    %cst_43 = arith.constant dense<0.000000e+00> : vector<8xf32>
    %71 = vector.multi_reduction <add>, %70, %cst_43 [1] : vector<8x128xf32> to vector<8xf32>
    %72 = vector.shape_cast %71 : vector<8xf32> to vector<8x1xf32>
    %cst_44 = arith.constant 1.280000e+02 : f32
    %73 = vector.broadcast %cst_44 : f32 to vector<8x1xf32>
    %74 = arith.divf %72, %73 : vector<8x1xf32>
    %75 = arith.mulf %69, %69 : vector<8x1xf32>
    %76 = arith.subf %74, %75 : vector<8x1xf32>
    %cst_45 = arith.constant 0.000000e+00 : f32
    %77 = vector.broadcast %cst_45 : f32 to vector<8x1xf32>
    %78 = arith.maximumf %76, %77 : vector<8x1xf32>
    %79 = vector.broadcast %69 : vector<8x1xf32> to vector<8x128xf32>
    %80 = arith.subf %61, %79 : vector<8x128xf32>
    %cst_46 = arith.constant 9.99999974E-6 : f32
    %81 = vector.broadcast %cst_46 : f32 to vector<8x1xf32>
    %82 = arith.addf %78, %81 : vector<8x1xf32>
    %83 = math.rsqrt %82 : vector<8x1xf32>
    %84 = vector.broadcast %83 : vector<8x1xf32> to vector<8x128xf32>
    %85 = arith.mulf %80, %84 : vector<8x128xf32>
    %86 = vector.broadcast %63 : vector<1x128xf32> to vector<8x128xf32>
    %87 = arith.mulf %85, %86 : vector<8x128xf32>
    %88 = vector.broadcast %65 : vector<1x128xf32> to vector<8x128xf32>
    %89 = arith.addf %87, %88 : vector<8x128xf32>
    %90 = arith.truncf %89 : vector<8x128xf32> to vector<8x128xbf16>
    %c0_47 = arith.constant 0 : index
    %c0_48 = arith.constant 0 : index
    %c0_49 = arith.constant 0 : index
    %91 = vector.load %arg11[%c0_47, %c0_48, %c0_49] : memref<2x128x64xbf16, #tpu.memory_space<vmem>>, vector<1x128x64xbf16>
    %92 = vector.shape_cast %91 : vector<1x128x64xbf16> to vector<128x64xbf16>
    %cst_50 = arith.constant dense<0.000000e+00> : vector<8x64xf32>
    %93 = tpu.matmul %90, %92, %cst_50 {dimension_numbers = #tpu.dot_dimension_numbers<[1], [0], [0], [1], [0, 0, 1, 1], [], []>} : vector<8x128xbf16>, vector<128x64xbf16>, vector<8x64xf32> -> vector<8x64xf32>
    %c0_51 = arith.constant 0 : index
    %c0_52 = arith.constant 0 : index
    %c0_53 = arith.constant 0 : index
    %94 = vector.load %arg12[%c0_51, %c0_52, %c0_53] : memref<2x1x64xf32, #tpu.memory_space<vmem>>, vector<1x1x64xf32>
    %95 = vector.shape_cast %94 : vector<1x1x64xf32> to vector<1x64xf32>
    %96 = vector.broadcast %95 : vector<1x64xf32> to vector<8x64xf32>
    %97 = arith.addf %93, %96 : vector<8x64xf32>
    %98 = arith.mulf %97, %97 : vector<8x64xf32>
    %99 = arith.mulf %97, %98 : vector<8x64xf32>
    %cst_54 = arith.constant 4.471500e-02 : f32
    %100 = vector.broadcast %cst_54 : f32 to vector<8x64xf32>
    %101 = arith.mulf %100, %99 : vector<8x64xf32>
    %102 = arith.addf %97, %101 : vector<8x64xf32>
    %cst_55 = arith.constant 0.797884583 : f32
    %103 = vector.broadcast %cst_55 : f32 to vector<8x64xf32>
    %104 = arith.mulf %103, %102 : vector<8x64xf32>
    %105 = math.tanh %104 : vector<8x64xf32>
    %cst_56 = arith.constant 1.000000e+00 : f32
    %106 = vector.broadcast %cst_56 : f32 to vector<8x64xf32>
    %107 = arith.addf %106, %105 : vector<8x64xf32>
    %cst_57 = arith.constant 5.000000e-01 : f32
    %108 = vector.broadcast %cst_57 : f32 to vector<8x64xf32>
    %109 = arith.mulf %108, %107 : vector<8x64xf32>
    %110 = arith.mulf %97, %109 : vector<8x64xf32>
    %111 = arith.truncf %110 : vector<8x64xf32> to vector<8x64xbf16>
    %c0_58 = arith.constant 0 : index
    %c0_59 = arith.constant 0 : index
    %c0_60 = arith.constant 0 : index
    %112 = vector.load %arg13[%c0_58, %c0_59, %c0_60] : memref<2x64x128xbf16, #tpu.memory_space<vmem>>, vector<1x64x128xbf16>
    %113 = vector.shape_cast %112 : vector<1x64x128xbf16> to vector<64x128xbf16>
    %cst_61 = arith.constant dense<0.000000e+00> : vector<8x128xf32>
    %114 = tpu.matmul %111, %113, %cst_61 {dimension_numbers = #tpu.dot_dimension_numbers<[1], [0], [0], [1], [0, 0, 1, 1], [], []>} : vector<8x64xbf16>, vector<64x128xbf16>, vector<8x128xf32> -> vector<8x128xf32>
    %c0_62 = arith.constant 0 : index
    %c0_63 = arith.constant 0 : index
    %c0_64 = arith.constant 0 : index
    %115 = vector.load %arg14[%c0_62, %c0_63, %c0_64] : memref<2x1x128xf32, #tpu.memory_space<vmem>>, vector<1x1x128xf32>
    %116 = vector.shape_cast %115 : vector<1x1x128xf32> to vector<1x128xf32>
    %117 = vector.broadcast %116 : vector<1x128xf32> to vector<8x128xf32>
    %118 = arith.addf %114, %117 : vector<8x128xf32>
    %119 = arith.addf %61, %118 : vector<8x128xf32>
    %c1 = arith.constant 1 : index
    %c0_65 = arith.constant 0 : index
    %c0_66 = arith.constant 0 : index
    %120 = vector.load %arg3[%c1, %c0_65, %c0_66] : memref<2x1x128xf32, #tpu.memory_space<vmem>>, vector<1x1x128xf32>
    %121 = vector.shape_cast %120 : vector<1x1x128xf32> to vector<1x128xf32>
    %c1_67 = arith.constant 1 : index
    %c0_68 = arith.constant 0 : index
    %c0_69 = arith.constant 0 : index
    %122 = vector.load %arg4[%c1_67, %c0_68, %c0_69] : memref<2x1x128xf32, #tpu.memory_space<vmem>>, vector<1x1x128xf32>
    %123 = vector.shape_cast %122 : vector<1x1x128xf32> to vector<1x128xf32>
    %cst_70 = arith.constant dense<0.000000e+00> : vector<8xf32>
    %124 = vector.multi_reduction <add>, %119, %cst_70 [1] : vector<8x128xf32> to vector<8xf32>
    %125 = vector.shape_cast %124 : vector<8xf32> to vector<8x1xf32>
    %cst_71 = arith.constant 1.280000e+02 : f32
    %126 = vector.broadcast %cst_71 : f32 to vector<8x1xf32>
    %127 = arith.divf %125, %126 : vector<8x1xf32>
    %128 = arith.mulf %119, %119 : vector<8x128xf32>
    %cst_72 = arith.constant dense<0.000000e+00> : vector<8xf32>
    %129 = vector.multi_reduction <add>, %128, %cst_72 [1] : vector<8x128xf32> to vector<8xf32>
    %130 = vector.shape_cast %129 : vector<8xf32> to vector<8x1xf32>
    %cst_73 = arith.constant 1.280000e+02 : f32
    %131 = vector.broadcast %cst_73 : f32 to vector<8x1xf32>
    %132 = arith.divf %130, %131 : vector<8x1xf32>
    %133 = arith.mulf %127, %127 : vector<8x1xf32>
    %134 = arith.subf %132, %133 : vector<8x1xf32>
    %cst_74 = arith.constant 0.000000e+00 : f32
    %135 = vector.broadcast %cst_74 : f32 to vector<8x1xf32>
    %136 = arith.maximumf %134, %135 : vector<8x1xf32>
    %137 = vector.broadcast %127 : vector<8x1xf32> to vector<8x128xf32>
    %138 = arith.subf %119, %137 : vector<8x128xf32>
    %cst_75 = arith.constant 9.99999974E-6 : f32
    %139 = vector.broadcast %cst_75 : f32 to vector<8x1xf32>
    %140 = arith.addf %136, %139 : vector<8x1xf32>
    %141 = math.rsqrt %140 : vector<8x1xf32>
    %142 = vector.broadcast %141 : vector<8x1xf32> to vector<8x128xf32>
    %143 = arith.mulf %138, %142 : vector<8x128xf32>
    %144 = vector.broadcast %121 : vector<1x128xf32> to vector<8x128xf32>
    %145 = arith.mulf %143, %144 : vector<8x128xf32>
    %146 = vector.broadcast %123 : vector<1x128xf32> to vector<8x128xf32>
    %147 = arith.addf %145, %146 : vector<8x128xf32>
    %148 = arith.truncf %147 : vector<8x128xf32> to vector<8x128xbf16>
    %c1_76 = arith.constant 1 : index
    %c0_77 = arith.constant 0 : index
    %c0_78 = arith.constant 0 : index
    %149 = vector.load %arg5[%c1_76, %c0_77, %c0_78] : memref<2x32x8xbf16, #tpu.memory_space<vmem>>, vector<1x32x8xbf16>
    %150 = vector.shape_cast %149 : vector<1x32x8xbf16> to vector<32x8xbf16>
    %cst_79 = arith.constant dense<0.000000e+00> : vector<32x128xf32>
    %151 = tpu.matmul %150, %148, %cst_79 {dimension_numbers = #tpu.dot_dimension_numbers<[1], [0], [0], [1], [0, 0, 1, 1], [], []>} : vector<32x8xbf16>, vector<8x128xbf16>, vector<32x128xf32> -> vector<32x128xf32>
    %c1_80 = arith.constant 1 : index
    %c0_81 = arith.constant 0 : index
    %c0_82 = arith.constant 0 : index
    %152 = vector.load %arg6[%c1_80, %c0_81, %c0_82] : memref<2x32x128xf32, #tpu.memory_space<vmem>>, vector<1x32x128xf32>
    %153 = vector.shape_cast %152 : vector<1x32x128xf32> to vector<32x128xf32>
    %154 = arith.addf %151, %153 : vector<32x128xf32>
    %155 = arith.mulf %154, %154 : vector<32x128xf32>
    %156 = arith.mulf %154, %155 : vector<32x128xf32>
    %cst_83 = arith.constant 4.471500e-02 : f32
    %157 = vector.broadcast %cst_83 : f32 to vector<32x128xf32>
    %158 = arith.mulf %157, %156 : vector<32x128xf32>
    %159 = arith.addf %154, %158 : vector<32x128xf32>
    %cst_84 = arith.constant 0.797884583 : f32
    %160 = vector.broadcast %cst_84 : f32 to vector<32x128xf32>
    %161 = arith.mulf %160, %159 : vector<32x128xf32>
    %162 = math.tanh %161 : vector<32x128xf32>
    %cst_85 = arith.constant 1.000000e+00 : f32
    %163 = vector.broadcast %cst_85 : f32 to vector<32x128xf32>
    %164 = arith.addf %163, %162 : vector<32x128xf32>
    %cst_86 = arith.constant 5.000000e-01 : f32
    %165 = vector.broadcast %cst_86 : f32 to vector<32x128xf32>
    %166 = arith.mulf %165, %164 : vector<32x128xf32>
    %167 = arith.mulf %154, %166 : vector<32x128xf32>
    %168 = arith.truncf %167 : vector<32x128xf32> to vector<32x128xbf16>
    %c1_87 = arith.constant 1 : index
    %c0_88 = arith.constant 0 : index
    %c0_89 = arith.constant 0 : index
    %169 = vector.load %arg7[%c1_87, %c0_88, %c0_89] : memref<2x8x32xbf16, #tpu.memory_space<vmem>>, vector<1x8x32xbf16>
    %170 = vector.shape_cast %169 : vector<1x8x32xbf16> to vector<8x32xbf16>
    %cst_90 = arith.constant dense<0.000000e+00> : vector<8x128xf32>
    %171 = tpu.matmul %170, %168, %cst_90 {dimension_numbers = #tpu.dot_dimension_numbers<[1], [0], [0], [1], [0, 0, 1, 1], [], []>} : vector<8x32xbf16>, vector<32x128xbf16>, vector<8x128xf32> -> vector<8x128xf32>
    %c1_91 = arith.constant 1 : index
    %c0_92 = arith.constant 0 : index
    %c0_93 = arith.constant 0 : index
    %172 = vector.load %arg8[%c1_91, %c0_92, %c0_93] : memref<2x8x128xf32, #tpu.memory_space<vmem>>, vector<1x8x128xf32>
    %173 = vector.shape_cast %172 : vector<1x8x128xf32> to vector<8x128xf32>
    %174 = arith.addf %171, %173 : vector<8x128xf32>
    %175 = arith.addf %119, %174 : vector<8x128xf32>
    %c1_94 = arith.constant 1 : index
    %c0_95 = arith.constant 0 : index
    %c0_96 = arith.constant 0 : index
    %176 = vector.load %arg9[%c1_94, %c0_95, %c0_96] : memref<2x1x128xf32, #tpu.memory_space<vmem>>, vector<1x1x128xf32>
    %177 = vector.shape_cast %176 : vector<1x1x128xf32> to vector<1x128xf32>
    %c1_97 = arith.constant 1 : index
    %c0_98 = arith.constant 0 : index
    %c0_99 = arith.constant 0 : index
    %178 = vector.load %arg10[%c1_97, %c0_98, %c0_99] : memref<2x1x128xf32, #tpu.memory_space<vmem>>, vector<1x1x128xf32>
    %179 = vector.shape_cast %178 : vector<1x1x128xf32> to vector<1x128xf32>
    %cst_100 = arith.constant dense<0.000000e+00> : vector<8xf32>
    %180 = vector.multi_reduction <add>, %175, %cst_100 [1] : vector<8x128xf32> to vector<8xf32>
    %181 = vector.shape_cast %180 : vector<8xf32> to vector<8x1xf32>
    %cst_101 = arith.constant 1.280000e+02 : f32
    %182 = vector.broadcast %cst_101 : f32 to vector<8x1xf32>
    %183 = arith.divf %181, %182 : vector<8x1xf32>
    %184 = arith.mulf %175, %175 : vector<8x128xf32>
    %cst_102 = arith.constant dense<0.000000e+00> : vector<8xf32>
    %185 = vector.multi_reduction <add>, %184, %cst_102 [1] : vector<8x128xf32> to vector<8xf32>
    %186 = vector.shape_cast %185 : vector<8xf32> to vector<8x1xf32>
    %cst_103 = arith.constant 1.280000e+02 : f32
    %187 = vector.broadcast %cst_103 : f32 to vector<8x1xf32>
    %188 = arith.divf %186, %187 : vector<8x1xf32>
    %189 = arith.mulf %183, %183 : vector<8x1xf32>
    %190 = arith.subf %188, %189 : vector<8x1xf32>
    %cst_104 = arith.constant 0.000000e+00 : f32
    %191 = vector.broadcast %cst_104 : f32 to vector<8x1xf32>
    %192 = arith.maximumf %190, %191 : vector<8x1xf32>
    %193 = vector.broadcast %183 : vector<8x1xf32> to vector<8x128xf32>
    %194 = arith.subf %175, %193 : vector<8x128xf32>
    %cst_105 = arith.constant 9.99999974E-6 : f32
    %195 = vector.broadcast %cst_105 : f32 to vector<8x1xf32>
    %196 = arith.addf %192, %195 : vector<8x1xf32>
    %197 = math.rsqrt %196 : vector<8x1xf32>
    %198 = vector.broadcast %197 : vector<8x1xf32> to vector<8x128xf32>
    %199 = arith.mulf %194, %198 : vector<8x128xf32>
    %200 = vector.broadcast %177 : vector<1x128xf32> to vector<8x128xf32>
    %201 = arith.mulf %199, %200 : vector<8x128xf32>
    %202 = vector.broadcast %179 : vector<1x128xf32> to vector<8x128xf32>
    %203 = arith.addf %201, %202 : vector<8x128xf32>
    %204 = arith.truncf %203 : vector<8x128xf32> to vector<8x128xbf16>
    %c1_106 = arith.constant 1 : index
    %c0_107 = arith.constant 0 : index
    %c0_108 = arith.constant 0 : index
    %205 = vector.load %arg11[%c1_106, %c0_107, %c0_108] : memref<2x128x64xbf16, #tpu.memory_space<vmem>>, vector<1x128x64xbf16>
    %206 = vector.shape_cast %205 : vector<1x128x64xbf16> to vector<128x64xbf16>
    %cst_109 = arith.constant dense<0.000000e+00> : vector<8x64xf32>
    %207 = tpu.matmul %204, %206, %cst_109 {dimension_numbers = #tpu.dot_dimension_numbers<[1], [0], [0], [1], [0, 0, 1, 1], [], []>} : vector<8x128xbf16>, vector<128x64xbf16>, vector<8x64xf32> -> vector<8x64xf32>
    %c1_110 = arith.constant 1 : index
    %c0_111 = arith.constant 0 : index
    %c0_112 = arith.constant 0 : index
    %208 = vector.load %arg12[%c1_110, %c0_111, %c0_112] : memref<2x1x64xf32, #tpu.memory_space<vmem>>, vector<1x1x64xf32>
    %209 = vector.shape_cast %208 : vector<1x1x64xf32> to vector<1x64xf32>
    %210 = vector.broadcast %209 : vector<1x64xf32> to vector<8x64xf32>
    %211 = arith.addf %207, %210 : vector<8x64xf32>
    %212 = arith.mulf %211, %211 : vector<8x64xf32>
    %213 = arith.mulf %211, %212 : vector<8x64xf32>
    %cst_113 = arith.constant 4.471500e-02 : f32
    %214 = vector.broadcast %cst_113 : f32 to vector<8x64xf32>
    %215 = arith.mulf %214, %213 : vector<8x64xf32>
    %216 = arith.addf %211, %215 : vector<8x64xf32>
    %cst_114 = arith.constant 0.797884583 : f32
    %217 = vector.broadcast %cst_114 : f32 to vector<8x64xf32>
    %218 = arith.mulf %217, %216 : vector<8x64xf32>
    %219 = math.tanh %218 : vector<8x64xf32>
    %cst_115 = arith.constant 1.000000e+00 : f32
    %220 = vector.broadcast %cst_115 : f32 to vector<8x64xf32>
    %221 = arith.addf %220, %219 : vector<8x64xf32>
    %cst_116 = arith.constant 5.000000e-01 : f32
    %222 = vector.broadcast %cst_116 : f32 to vector<8x64xf32>
    %223 = arith.mulf %222, %221 : vector<8x64xf32>
    %224 = arith.mulf %211, %223 : vector<8x64xf32>
    %225 = arith.truncf %224 : vector<8x64xf32> to vector<8x64xbf16>
    %c1_117 = arith.constant 1 : index
    %c0_118 = arith.constant 0 : index
    %c0_119 = arith.constant 0 : index
    %226 = vector.load %arg13[%c1_117, %c0_118, %c0_119] : memref<2x64x128xbf16, #tpu.memory_space<vmem>>, vector<1x64x128xbf16>
    %227 = vector.shape_cast %226 : vector<1x64x128xbf16> to vector<64x128xbf16>
    %cst_120 = arith.constant dense<0.000000e+00> : vector<8x128xf32>
    %228 = tpu.matmul %225, %227, %cst_120 {dimension_numbers = #tpu.dot_dimension_numbers<[1], [0], [0], [1], [0, 0, 1, 1], [], []>} : vector<8x64xbf16>, vector<64x128xbf16>, vector<8x128xf32> -> vector<8x128xf32>
    %c1_121 = arith.constant 1 : index
    %c0_122 = arith.constant 0 : index
    %c0_123 = arith.constant 0 : index
    %229 = vector.load %arg14[%c1_121, %c0_122, %c0_123] : memref<2x1x128xf32, #tpu.memory_space<vmem>>, vector<1x1x128xf32>
    %230 = vector.shape_cast %229 : vector<1x1x128xf32> to vector<1x128xf32>
    %231 = vector.broadcast %230 : vector<1x128xf32> to vector<8x128xf32>
    %232 = arith.addf %228, %231 : vector<8x128xf32>
    %233 = arith.addf %175, %232 : vector<8x128xf32>
    %c0_124 = arith.constant 0 : index
    %c0_125 = arith.constant 0 : index
    %234 = vector.load %arg15[%c0_124, %c0_125] : memref<1x128xf32, #tpu.memory_space<vmem>>, vector<1x128xf32>
    %c0_126 = arith.constant 0 : index
    %c0_127 = arith.constant 0 : index
    %235 = vector.load %arg16[%c0_126, %c0_127] : memref<1x128xf32, #tpu.memory_space<vmem>>, vector<1x128xf32>
    %cst_128 = arith.constant dense<0.000000e+00> : vector<8xf32>
    %236 = vector.multi_reduction <add>, %233, %cst_128 [1] : vector<8x128xf32> to vector<8xf32>
    %237 = vector.shape_cast %236 : vector<8xf32> to vector<8x1xf32>
    %cst_129 = arith.constant 1.280000e+02 : f32
    %238 = vector.broadcast %cst_129 : f32 to vector<8x1xf32>
    %239 = arith.divf %237, %238 : vector<8x1xf32>
    %240 = arith.mulf %233, %233 : vector<8x128xf32>
    %cst_130 = arith.constant dense<0.000000e+00> : vector<8xf32>
    %241 = vector.multi_reduction <add>, %240, %cst_130 [1] : vector<8x128xf32> to vector<8xf32>
    %242 = vector.shape_cast %241 : vector<8xf32> to vector<8x1xf32>
    %cst_131 = arith.constant 1.280000e+02 : f32
    %243 = vector.broadcast %cst_131 : f32 to vector<8x1xf32>
    %244 = arith.divf %242, %243 : vector<8x1xf32>
    %245 = arith.mulf %239, %239 : vector<8x1xf32>
    %246 = arith.subf %244, %245 : vector<8x1xf32>
    %cst_132 = arith.constant 0.000000e+00 : f32
    %247 = vector.broadcast %cst_132 : f32 to vector<8x1xf32>
    %248 = arith.maximumf %246, %247 : vector<8x1xf32>
    %249 = vector.broadcast %239 : vector<8x1xf32> to vector<8x128xf32>
    %250 = arith.subf %233, %249 : vector<8x128xf32>
    %cst_133 = arith.constant 9.99999974E-6 : f32
    %251 = vector.broadcast %cst_133 : f32 to vector<8x1xf32>
    %252 = arith.addf %248, %251 : vector<8x1xf32>
    %253 = math.rsqrt %252 : vector<8x1xf32>
    %254 = vector.broadcast %253 : vector<8x1xf32> to vector<8x128xf32>
    %255 = arith.mulf %250, %254 : vector<8x128xf32>
    %256 = vector.broadcast %234 : vector<1x128xf32> to vector<8x128xf32>
    %257 = arith.mulf %255, %256 : vector<8x128xf32>
    %258 = vector.broadcast %235 : vector<1x128xf32> to vector<8x128xf32>
    %259 = arith.addf %257, %258 : vector<8x128xf32>
    %c0_134 = arith.constant 0 : index
    %c0_135 = arith.constant 0 : index
    %260 = vector.load %arg17[%c0_134, %c0_135] : memref<2x8xf32, #tpu.memory_space<vmem>>, vector<2x8xf32>
    %cst_136 = arith.constant dense<0.000000e+00> : vector<2x128xf32>
    %261 = tpu.matmul %260, %259, %cst_136 {dimension_numbers = #tpu.dot_dimension_numbers<[1], [0], [0], [1], [0, 0, 1, 1], [], []>} : vector<2x8xf32>, vector<8x128xf32>, vector<2x128xf32> -> vector<2x128xf32>
    %262 = arith.truncf %261 : vector<2x128xf32> to vector<2x128xbf16>
    %c0_137 = arith.constant 0 : index
    %c0_138 = arith.constant 0 : index
    %263 = vector.load %arg18[%c0_137, %c0_138] : memref<128x128xbf16, #tpu.memory_space<vmem>>, vector<128x128xbf16>
    %cst_139 = arith.constant dense<0.000000e+00> : vector<2x128xf32>
    %264 = tpu.matmul %262, %263, %cst_139 {dimension_numbers = #tpu.dot_dimension_numbers<[1], [0], [0], [1], [0, 0, 1, 1], [], []>} : vector<2x128xbf16>, vector<128x128xbf16>, vector<2x128xf32> -> vector<2x128xf32>
    %c0_140 = arith.constant 0 : index
    %c0_141 = arith.constant 0 : index
    %265 = vector.load %arg19[%c0_140, %c0_141] : memref<1x128xf32, #tpu.memory_space<vmem>>, vector<1x128xf32>
    %266 = vector.broadcast %265 : vector<1x128xf32> to vector<2x128xf32>
    %267 = arith.addf %264, %266 : vector<2x128xf32>
    %c0_142 = arith.constant 0 : index
    %c0_143 = arith.constant 0 : index
    %268 = vector.load %arg20[%c0_142, %c0_143] : memref<2x128xf32, #tpu.memory_space<vmem>>, vector<2x128xf32>
    tpu.vector_store %arg20[%c0_142, %c0_143], %267 {strides = array<i32>} : memref<2x128xf32, #tpu.memory_space<vmem>>, vector<2x128xf32>,
    return
  }
}

</mosaic_0001>

<llo_original>
// kernel: tpu_custom_call.1
$region0: #{tpu_custom_call.1}
  #allocation0 [shape = 'u32[]', space=smem, size = 0x4, offset = 0x4, fixed_abs, tag = 'smem constant byte address 0x4 - core index']
  #allocation1 [shape = 'u32[144,128]{1,0:T(1,128)}', space=vmem, size = 0x12000, scoped, tag = 'internal scratch']
  %s0 = inlined_call_operand.hbm [shape: bf16[8,128], index: 0, kind: input, shape index: {}]
  %s1 = inlined_call_operand.vmem [shape: bf16[128,128], index: 1, kind: input, shape index: {}]
  %s2 = inlined_call_operand.vmem [shape: f32[1,128], index: 2, kind: input, shape index: {}]
  %s3 = inlined_call_operand.hbm [shape: f32[2,1,128], index: 3, kind: input, shape index: {}]
  %s4 = inlined_call_operand.hbm [shape: f32[2,1,128], index: 4, kind: input, shape index: {}]
  %s5 = inlined_call_operand.vmem [shape: bf16[2,32,8], index: 5, kind: input, shape index: {}]
  %s6 = inlined_call_operand.vmem [shape: f32[2,32,128], index: 6, kind: input, shape index: {}]
  %s7 = inlined_call_operand.hbm [shape: bf16[2,8,32], index: 7, kind: input, shape index: {}]
  %s8 = inlined_call_operand.hbm [shape: f32[2,8,128], index: 8, kind: input, shape index: {}]
  %s9 = inlined_call_operand.hbm [shape: f32[2,1,128], index: 9, kind: input, shape index: {}]
  %s10 = inlined_call_operand.hbm [shape: f32[2,1,128], index: 10, kind: input, shape index: {}]
  %s11 = inlined_call_operand.vmem [shape: bf16[2,128,64], index: 11, kind: input, shape index: {}]
  %s12 = inlined_call_operand.hbm [shape: f32[2,1,64], index: 12, kind: input, shape index: {}]
  %s13 = inlined_call_operand.vmem [shape: bf16[2,64,128], index: 13, kind: input, shape index: {}]
  %s14 = inlined_call_operand.hbm [shape: f32[2,1,128], index: 14, kind: input, shape index: {}]
  %s15 = inlined_call_operand.hbm [shape: f32[1,128], index: 15, kind: input, shape index: {}]
  %s16 = inlined_call_operand.vmem [shape: f32[1,128], index: 16, kind: input, shape index: {}]
  %s17 = inlined_call_operand.vmem [shape: f32[2,8], index: 17, kind: input, shape index: {}]
  %s18 = inlined_call_operand.vmem [shape: bf16[128,128], index: 18, kind: input, shape index: {}]
  %s19 = inlined_call_operand.vmem [shape: f32[1,128], index: 19, kind: input, shape index: {}]
  %s20 = inlined_call_operand.hbm [shape: f32[2,128], index: 20, kind: output, shape index: {}]
  %s21 = sld [smem:[#allocation0]]
  $region130: #{tpu_custom_call.1} parent=0
    _
  %s23 = ssub.s32 1, %s21
  %s24 = scalar_select 0, %s23, %s21
  $region1: #{tpu_custom_call.1} parent=0
    #allocation2 [shape = 'u8[2048]{0}', space=vmem, size = 0x800, scoped, tag = 'input window, operand 0, single buffered']
    #allocation3 [shape = 's32[1]{0}', space=sflag, size = 0x4, scoped, tag = 'scoped memory for tpu_custom_call.1']
    #allocation4 [shape = 's32[1]{0}', space=sflag, size = 0x4, scoped, tag = 'scoped memory for tpu_custom_call.1']
    #allocation5 [shape = 'u8[1024]{0}', space=vmem, size = 0x400, scoped, tag = 'input window, operand 3, single buffered']
    #allocation6 [shape = 's32[1]{0}', space=sflag, size = 0x4, scoped, tag = 'scoped memory for tpu_custom_call.1']
    #allocation7 [shape = 'u8[1024]{0}', space=vmem, size = 0x400, scoped, tag = 'input window, operand 4, single buffered']
    #allocation8 [shape = 'u8[4096]{0}', space=vmem, size = 0x1000, scoped, tag = 'input window, operand 7, single buffered']
    #allocation9 [shape = 's32[1]{0}', space=sflag, size = 0x4, scoped, tag = 'scoped memory for tpu_custom_call.1']
    #allocation10 [shape = 'u8[8192]{0}', space=vmem, size = 0x2000, scoped, tag = 'input window, operand 8, single buffered']
    #allocation11 [shape = 'u8[1024]{0}', space=vmem, size = 0x400, scoped, tag = 'input window, operand 9, single buffered']
    #allocation12 [shape = 's32[1]{0}', space=sflag, size = 0x4, scoped, tag = 'scoped memory for tpu_custom_call.1']
    #allocation13 [shape = 'u8[1024]{0}', space=vmem, size = 0x400, scoped, tag = 'input window, operand 10, single buffered']
    #allocation14 [shape = 'u8[1024]{0}', space=vmem, size = 0x400, scoped, tag = 'input window, operand 12, single buffered']
    #allocation15 [shape = 's32[1]{0}', space=sflag, size = 0x4, scoped, tag = 'scoped memory for tpu_custom_call.1']
    #allocation16 [shape = 'u8[1024]{0}', space=vmem, size = 0x400, scoped, tag = 'input window, operand 14, single buffered']
    #allocation17 [shape = 'u8[512]{0}', space=vmem, size = 0x400, scoped, tag = 'input window, operand 15, single buffered']
    #allocation18 [shape = 's32[1]{0}', space=sflag, size = 0x4, scoped, tag = 'scoped memory for tpu_custom_call.1']
    #allocation19 [shape = 'u8[1024]{0}', space=vmem, size = 0x400, scoped, tag = 'output window, operand 0, single buffered']
    %25 = vsyncpa [#allocation3], 0
    %26 = vsyncpa [#allocation6], 0
    %27 = vsyncpa [#allocation9], 0
    %28 = vsyncpa [#allocation12], 0
    %29 = vsyncpa [#allocation15], 0
    %30 = vsyncpa [#allocation18], 0
    %31 = vsyncpa [#allocation4], 0
    // Predicated region
    $region2: #{tpu_custom_call.1} parent=1 // pred_check
      _
    $region3: #{tpu_custom_call.1} parent=1 // pred_check_branch
      %33 = sbr.rel (0) target = $region5
    $region4: #{tpu_custom_call.1} parent=1 // pred_region
      %s35 = ssub.s32 64, 64
      %36 = vsyncadd [#allocation3], %s35
      %s38 = sshll.u32 [#allocation2], 4
      %s39 = int_to_ptr.vmem [resolvable:$true] %s38
      %41 = dma.hbm_to_vmem [thread:$0]  %s0, 64, %s39, [#allocation3]
    $region5: #{tpu_custom_call.1} parent=1 // pred_fallthru
      _
    // Predicated region
    $region6: #{tpu_custom_call.1} parent=1 // pred_check
      _
    $region7: #{tpu_custom_call.1} parent=1 // pred_check_branch
      %43 = sbr.rel (0) target = $region9
    $region8: #{tpu_custom_call.1} parent=1 // pred_region
      _
    $region9: #{tpu_custom_call.1} parent=1 // pred_fallthru
      _
    // Predicated region
    $region10: #{tpu_custom_call.1} parent=1 // pred_check
      _
    $region11: #{tpu_custom_call.1} parent=1 // pred_check_branch
      %45 = sbr.rel (0) target = $region13
    $region12: #{tpu_custom_call.1} parent=1 // pred_region
      _
    $region13: #{tpu_custom_call.1} parent=1 // pred_fallthru
      _
    // Predicated region
    $region14: #{tpu_custom_call.1} parent=1 // pred_check
      _
    $region15: #{tpu_custom_call.1} parent=1 // pred_check_branch
      %47 = sbr.rel (0) target = $region17
    $region16: #{tpu_custom_call.1} parent=1 // pred_region
      %s49 = ssub.s32 32, 32
      %50 = vsyncadd [#allocation6], %s49
      %s51 = sshll.u32 [#allocation5], 4
      %s52 = int_to_ptr.vmem [resolvable:$true] %s51
      %57 = dma.hbm_to_vmem [thread:$0]  %s3, 32, %s52, [#allocation6], 16, 16, 1
    $region17: #{tpu_custom_call.1} parent=1 // pred_fallthru
      _
    // Predicated region
    $region18: #{tpu_custom_call.1} parent=1 // pred_check
      _
    $region19: #{tpu_custom_call.1} parent=1 // pred_check_branch
      %59 = sbr.rel (0) target = $region21
    $region20: #{tpu_custom_call.1} parent=1 // pred_region
      %s61 = ssub.s32 32, 32
      %62 = vsyncadd [#allocation6], %s61
      %s63 = sshll.u32 [#allocation7], 4
      %s64 = int_to_ptr.vmem [resolvable:$true] %s63
      %69 = dma.hbm_to_vmem [thread:$0]  %s4, 32, %s64, [#allocation6], 16, 16, 1
    $region21: #{tpu_custom_call.1} parent=1 // pred_fallthru
      _
    // Predicated region
    $region22: #{tpu_custom_call.1} parent=1 // pred_check
      _
    $region23: #{tpu_custom_call.1} parent=1 // pred_check_branch
      %71 = sbr.rel (0) target = $region25
    $region24: #{tpu_custom_call.1} parent=1 // pred_region
      _
    $region25: #{tpu_custom_call.1} parent=1 // pred_fallthru
      _
    // Predicated region
    $region26: #{tpu_custom_call.1} parent=1 // pred_check
      _
    $region27: #{tpu_custom_call.1} parent=1 // pred_check_branch
      %73 = sbr.rel (0) target = $region29
    $region28: #{tpu_custom_call.1} parent=1 // pred_region
      _
    $region29: #{tpu_custom_call.1} parent=1 // pred_fallthru
      _
    // Predicated region
    $region30: #{tpu_custom_call.1} parent=1 // pred_check
      _
    $region31: #{tpu_custom_call.1} parent=1 // pred_check_branch
      %75 = sbr.rel (0) target = $region33
    $region32: #{tpu_custom_call.1} parent=1 // pred_region
      %s77 = ssub.s32 128, 128
      %78 = vsyncadd [#allocation9], %s77
      %s79 = sshll.u32 [#allocation8], 4
      %s80 = int_to_ptr.vmem [resolvable:$true] %s79
      %85 = dma.hbm_to_vmem [thread:$0]  %s7, 128, %s80, [#allocation9], 64, 64, 4
    $region33: #{tpu_custom_call.1} parent=1 // pred_fallthru
      _
    // Predicated region
    $region34: #{tpu_custom_call.1} parent=1 // pred_check
      _
    $region35: #{tpu_custom_call.1} parent=1 // pred_check_branch
      %87 = sbr.rel (0) target = $region37
    $region36: #{tpu_custom_call.1} parent=1 // pred_region
      %s89 = ssub.s32 256, 256
      %90 = vsyncadd [#allocation9], %s89
      %s91 = sshll.u32 [#allocation10], 4
      %s92 = int_to_ptr.vmem [resolvable:$true] %s91
      %97 = dma.hbm_to_vmem [thread:$0]  %s8, 256, %s92, [#allocation9], 128, 128, 8
    $region37: #{tpu_custom_call.1} parent=1 // pred_fallthru
      _
    // Predicated region
    $region38: #{tpu_custom_call.1} parent=1 // pred_check
      _
    $region39: #{tpu_custom_call.1} parent=1 // pred_check_branch
      %99 = sbr.rel (0) target = $region41
    $region40: #{tpu_custom_call.1} parent=1 // pred_region
      %s101 = ssub.s32 32, 32
      %102 = vsyncadd [#allocation12], %s101
      %s103 = sshll.u32 [#allocation11], 4
      %s104 = int_to_ptr.vmem [resolvable:$true] %s103
      %109 = dma.hbm_to_vmem [thread:$0]  %s9, 32, %s104, [#allocation12], 16, 16, 1
    $region41: #{tpu_custom_call.1} parent=1 // pred_fallthru
      _
    // Predicated region
    $region42: #{tpu_custom_call.1} parent=1 // pred_check
      _
    $region43: #{tpu_custom_call.1} parent=1 // pred_check_branch
      %111 = sbr.rel (0) target = $region45
    $region44: #{tpu_custom_call.1} parent=1 // pred_region
      %s113 = ssub.s32 32, 32
      %114 = vsyncadd [#allocation12], %s113
      %s115 = sshll.u32 [#allocation13], 4
      %s116 = int_to_ptr.vmem [resolvable:$true] %s115
      %121 = dma.hbm_to_vmem [thread:$0]  %s10, 32, %s116, [#allocation12], 16, 16, 1
    $region45: #{tpu_custom_call.1} parent=1 // pred_fallthru
      _
    // Predicated region
    $region46: #{tpu_custom_call.1} parent=1 // pred_check
      _
    $region47: #{tpu_custom_call.1} parent=1 // pred_check_branch
      %123 = sbr.rel (0) target = $region49
    $region48: #{tpu_custom_call.1} parent=1 // pred_region
      _
    $region49: #{tpu_custom_call.1} parent=1 // pred_fallthru
      _
    // Predicated region
    $region50: #{tpu_custom_call.1} parent=1 // pred_check
      _
    $region51: #{tpu_custom_call.1} parent=1 // pred_check_branch
      %125 = sbr.rel (0) target = $region53
    $region52: #{tpu_custom_call.1} parent=1 // pred_region
      %s127 = ssub.s32 32, 32
      %128 = vsyncadd [#allocation15], %s127
      %s129 = sshll.u32 [#allocation14], 4
      %s130 = int_to_ptr.vmem [resolvable:$true] %s129
      %135 = dma.hbm_to_vmem [thread:$0]  %s12, 32, %s130, [#allocation15], 16, 16, 1
    $region53: #{tpu_custom_call.1} parent=1 // pred_fallthru
      _
    // Predicated region
    $region54: #{tpu_custom_call.1} parent=1 // pred_check
      _
    $region55: #{tpu_custom_call.1} parent=1 // pred_check_branch
      %137 = sbr.rel (0) target = $region57
    $region56: #{tpu_custom_call.1} parent=1 // pred_region
      _
    $region57: #{tpu_custom_call.1} parent=1 // pred_fallthru
      _
    // Predicated region
    $region58: #{tpu_custom_call.1} parent=1 // pred_check
      _
    $region59: #{tpu_custom_call.1} parent=1 // pred_check_branch
      %139 = sbr.rel (0) target = $region61
    $region60: #{tpu_custom_call.1} parent=1 // pred_region
      %s141 = ssub.s32 32, 32
      %142 = vsyncadd [#allocation15], %s141
      %s143 = sshll.u32 [#allocation16], 4
      %s144 = int_to_ptr.vmem [resolvable:$true] %s143
      %149 = dma.hbm_to_vmem [thread:$0]  %s14, 32, %s144, [#allocation15], 16, 16, 1
    $region61: #{tpu_custom_call.1} parent=1 // pred_fallthru
      _
    // Predicated region
    $region62: #{tpu_custom_call.1} parent=1 // pred_check
      _
    $region63: #{tpu_custom_call.1} parent=1 // pred_check_branch
      %151 = sbr.rel (0) target = $region65
    $region64: #{tpu_custom_call.1} parent=1 // pred_region
      %s153 = ssub.s32 16, 16
      %154 = vsyncadd [#allocation18], %s153
      %s156 = sshll.u32 [#allocation17], 4
      %s157 = int_to_ptr.vmem [resolvable:$true] %s156
      %159 = dma.hbm_to_vmem [thread:$0]  %s15, 16, %s157, [#allocation18]
    $region65: #{tpu_custom_call.1} parent=1 // pred_fallthru
      _
    // Predicated region
    $region66: #{tpu_custom_call.1} parent=1 // pred_check
      _
    $region67: #{tpu_custom_call.1} parent=1 // pred_check_branch
      %161 = sbr.rel (0) target = $region69
    $region68: #{tpu_custom_call.1} parent=1 // pred_region
      _
    $region69: #{tpu_custom_call.1} parent=1 // pred_fallthru
      _
    // Predicated region
    $region70: #{tpu_custom_call.1} parent=1 // pred_check
      _
    $region71: #{tpu_custom_call.1} parent=1 // pred_check_branch
      %163 = sbr.rel (0) target = $region73
    $region72: #{tpu_custom_call.1} parent=1 // pred_region
      _
    $region73: #{tpu_custom_call.1} parent=1 // pred_fallthru
      _
    // Predicated region
    $region74: #{tpu_custom_call.1} parent=1 // pred_check
      _
    $region75: #{tpu_custom_call.1} parent=1 // pred_check_branch
      %165 = sbr.rel (0) target = $region77
    $region76: #{tpu_custom_call.1} parent=1 // pred_region
      _
    $region77: #{tpu_custom_call.1} parent=1 // pred_fallthru
      _
    // Predicated region
    $region78: #{tpu_custom_call.1} parent=1 // pred_check
      _
    $region79: #{tpu_custom_call.1} parent=1 // pred_check_branch
      %167 = sbr.rel (0) target = $region81
    $region80: #{tpu_custom_call.1} parent=1 // pred_region
      _
    $region81: #{tpu_custom_call.1} parent=1 // pred_fallthru
      _
    // Predicated region
    $region82: #{tpu_custom_call.1} parent=1 // pred_check
      _
    $region83: #{tpu_custom_call.1} parent=1 // pred_check_branch
      %169 = sbr.rel (0) target = $region85
    $region84: #{tpu_custom_call.1} parent=1 // pred_region
      %170 = dma.done [#allocation3], 64
    $region85: #{tpu_custom_call.1} parent=1 // pred_fallthru
      _
    // Predicated region
    $region86: #{tpu_custom_call.1} parent=1 // pred_check
      _
    $region87: #{tpu_custom_call.1} parent=1 // pred_check_branch
      %172 = sbr.rel (0) target = $region89
    $region88: #{tpu_custom_call.1} parent=1 // pred_region
      %173 = dma.done [#allocation6], 32
    $region89: #{tpu_custom_call.1} parent=1 // pred_fallthru
      _
    // Predicated region
    $region90: #{tpu_custom_call.1} parent=1 // pred_check
      _
    $region91: #{tpu_custom_call.1} parent=1 // pred_check_branch
      %175 = sbr.rel (0) target = $region93
    $region92: #{tpu_custom_call.1} parent=1 // pred_region
      %176 = dma.done [#allocation6], 32
    $region93: #{tpu_custom_call.1} parent=1 // pred_fallthru
      _
    // Predicated region
    $region94: #{tpu_custom_call.1} parent=1 // pred_check
      _
    $region95: #{tpu_custom_call.1} parent=1 // pred_check_branch
      %178 = sbr.rel (0) target = $region97
    $region96: #{tpu_custom_call.1} parent=1 // pred_region
      %179 = dma.done [#allocation9], 128
    $region97: #{tpu_custom_call.1} parent=1 // pred_fallthru
      _
    // Predicated region
    $region98: #{tpu_custom_call.1} parent=1 // pred_check
      _
    $region99: #{tpu_custom_call.1} parent=1 // pred_check_branch
      %181 = sbr.rel (0) target = $region101
    $region100: #{tpu_custom_call.1} parent=1 // pred_region
      %182 = dma.done [#allocation9], 256
    $region101: #{tpu_custom_call.1} parent=1 // pred_fallthru
      _
    // Predicated region
    $region102: #{tpu_custom_call.1} parent=1 // pred_check
      _
    $region103: #{tpu_custom_call.1} parent=1 // pred_check_branch
      %184 = sbr.rel (0) target = $region105
    $region104: #{tpu_custom_call.1} parent=1 // pred_region
      %185 = dma.done [#allocation12], 32
    $region105: #{tpu_custom_call.1} parent=1 // pred_fallthru
      _
    // Predicated region
    $region106: #{tpu_custom_call.1} parent=1 // pred_check
      _
    $region107: #{tpu_custom_call.1} parent=1 // pred_check_branch
      %187 = sbr.rel (0) target = $region109
    $region108: #{tpu_custom_call.1} parent=1 // pred_region
      %188 = dma.done [#allocation12], 32
    $region109: #{tpu_custom_call.1} parent=1 // pred_fallthru
      _
    // Predicated region
    $region110: #{tpu_custom_call.1} parent=1 // pred_check
      _
    $region111: #{tpu_custom_call.1} parent=1 // pred_check_branch
      %190 = sbr.rel (0) target = $region113
    $region112: #{tpu_custom_call.1} parent=1 // pred_region
      %191 = dma.done [#allocation15], 32
    $region113: #{tpu_custom_call.1} parent=1 // pred_fallthru
      _
    // Predicated region
    $region114: #{tpu_custom_call.1} parent=1 // pred_check
      _
    $region115: #{tpu_custom_call.1} parent=1 // pred_check_branch
      %193 = sbr.rel (0) target = $region117
    $region116: #{tpu_custom_call.1} parent=1 // pred_region
      %194 = dma.done [#allocation15], 32
    $region117: #{tpu_custom_call.1} parent=1 // pred_fallthru
      _
    // Predicated region
    $region118: #{tpu_custom_call.1} parent=1 // pred_check
      _
    $region119: #{tpu_custom_call.1} parent=1 // pred_check_branch
      %196 = sbr.rel (0) target = $region121
    $region120: #{tpu_custom_call.1} parent=1 // pred_region
      %197 = dma.done [#allocation18], 16
    $region121: #{tpu_custom_call.1} parent=1 // pred_fallthru
      _
    %v199 = vld [vmem:[#allocation2] sm:$0xf]
    %v200 = vld [vmem:[%s1] sm:$0xf]
    %v201 = vld [vmem:[%s1 + $0x4] sm:$0xf]
    %v202 = vld [vmem:[%s1 + $0x8] sm:$0xf]
    %v203 = vld [vmem:[%s1 + $0xc] sm:$0xf]
    %v204 = vld [vmem:[%s1 + $0x10] sm:$0xf]
    %v205 = vld [vmem:[%s1 + $0x14] sm:$0xf]
    %v206 = vld [vmem:[%s1 + $0x18] sm:$0xf]
    %v207 = vld [vmem:[%s1 + $0x1c] sm:$0xf]
    %v208 = vld [vmem:[%s1 + $0x20] sm:$0xf]
    %v209 = vld [vmem:[%s1 + $0x24] sm:$0xf]
    %v210 = vld [vmem:[%s1 + $0x28] sm:$0xf]
    %v211 = vld [vmem:[%s1 + $0x2c] sm:$0xf]
    %v212 = vld [vmem:[%s1 + $0x30] sm:$0xf]
    %v213 = vld [vmem:[%s1 + $0x34] sm:$0xf]
    %v214 = vld [vmem:[%s1 + $0x38] sm:$0xf]
    %v215 = vld [vmem:[%s1 + $0x3c] sm:$0xf]
    %v216 = vld [vmem:[%s2] sm:$0x1]
    %v218 = vlaneseq
    %v219 = vshrl.u32 %v218, 7
    %v220 = vsub.s32 0, %v219
    %v221 = vrot.slane %v216, %v220
    %v239 = vunpack.c.l.b16 %v200
    %v240 = vunpack.c.l.b16 %v201
    %v241 = vunpack.c.l.b16 %v202
    %v242 = vunpack.c.l.b16 %v203
    %v243 = vunpack.c.l.b16 %v204
    %v244 = vunpack.c.l.b16 %v205
    %v245 = vunpack.c.l.b16 %v206
    %v246 = vunpack.c.l.b16 %v207
    %v247 = vunpack.c.l.b16 %v208
    %v248 = vunpack.c.l.b16 %v209
    %v249 = vunpack.c.l.b16 %v210
    %v250 = vunpack.c.l.b16 %v211
    %v251 = vunpack.c.l.b16 %v212
    %v252 = vunpack.c.l.b16 %v213
    %v253 = vunpack.c.l.b16 %v214
    %v254 = vunpack.c.l.b16 %v215
    %v255 = vpack.c.b16 %v240, %v239
    %v256 = vpack.c.b16 %v242, %v241
    %v257 = vpack.c.b16 %v244, %v243
    %v258 = vpack.c.b16 %v246, %v245
    %v259 = vpack.c.b16 %v248, %v247
    %v260 = vpack.c.b16 %v250, %v249
    %v261 = vpack.c.b16 %v252, %v251
    %v262 = vpack.c.b16 %v254, %v253
    %271 = vmatprep.subr.bf16.mxu0 0
    %272 = vmatpush1.bf16.msra.mxu0 %v262
    %273 = vmatprep.subr.bf16.mxu0 0
    %274 = vmatpush1.bf16.msra.mxu0 %v261
    %275 = vmatprep.subr.bf16.mxu0 0
    %276 = vmatpush1.bf16.msra.mxu0 %v260
    %277 = vmatprep.subr.bf16.mxu0 0
    %278 = vmatpush1.bf16.msra.mxu0 %v259
    %279 = vmatprep.subr.bf16.mxu0 0
    %280 = vmatpush1.bf16.msra.mxu0 %v258
    %281 = vmatprep.subr.bf16.mxu0 0
    %282 = vmatpush1.bf16.msra.mxu0 %v257
    %283 = vmatprep.subr.bf16.mxu0 0
    %284 = vmatpush1.bf16.msra.mxu0 %v256
    %285 = vmatprep.subr.bf16.mxu0 0
    %286 = vmatpush1.bf16.msra.mxu0 %v255
    %287 = vmatprep.subr.bf16.mxu0 0
    %288 = vmatpush2.bf16.msra.mxu0 0
    %289 = vmatprep.subr.bf16.mxu0 0
    %290 = vmatpush2.bf16.msra.mxu0 0
    %291 = vmatprep.subr.bf16.mxu0 0
    %292 = vmatpush2.bf16.msra.mxu0 0
    %293 = vmatprep.subr.bf16.mxu0 0
    %294 = vmatpush2.bf16.msra.mxu0 0
    %295 = vmatprep.subr.bf16.mxu0 0
    %296 = vmatpush2.bf16.msra.mxu0 0
    %297 = vmatprep.subr.bf16.mxu0 0
    %298 = vmatpush2.bf16.msra.mxu0 0
    %299 = vmatprep.subr.bf16.mxu0 0
    %300 = vmatpush2.bf16.msra.mxu0 0
    %301 = vmatprep.subr.bf16.mxu0 0
    %302 = vmatpush2.bf16.msra.mxu0 0
    %303 = vmatprep.mubr.bf16.mxu0 0
    %304 = vmatmul.mubr.bf16.gmra.mxu0 %v199
    %v305 = vpop.f32.mrf.mxu0
    %v306 = vadd.f32 %v221, %v305
    %v307 = vpop.f32.mrf.mxu0
    %v308 = vpop.f32.mrf.mxu0
    %v309 = vpop.f32.mrf.mxu0
    %310 = vdwg.mxu0
    %v311 = vld [vmem:[#allocation5] sm:$0x1]
    %v312 = vld [vmem:[#allocation7] sm:$0x1]
    %313 = vadd.xlane.f32.xlu0 %v306
    %v314 = vpop.xlane.xlu0 %313
    %v315 = vrcp.pop 128.0
    %v316 = vmul.f32 %v314, %v315
    %v317 = vmul.f32 %v306, %v306
    %318 = vadd.xlane.f32.xlu0 %v317
    %v319 = vpop.xlane.xlu0 %318
    %v320 = vmul.f32 %v319, %v315
    %v321 = vmul.f32 %v316, %v316
    %v322 = vsub.f32 %v320, %v321
    %v323 = vmax.f32 %v322, 0.0
    %v324 = vsub.f32 %v306, %v316
    %v325 = vadd.f32 %v323, 1e-05
    %v326 = vrsqrt.pop %v325
    %v327 = vmul.f32 %v324, %v326
    %v329 = vlaneseq
    %v330 = vshrl.u32 %v329, 7
    %v331 = vsub.s32 0, %v330
    %v332 = vrot.slane %v311, %v331
    %v334 = vmul.f32 %v327, %v332
    %v336 = vlaneseq
    %v337 = vshrl.u32 %v336, 7
    %v338 = vsub.s32 0, %v337
    %v339 = vrot.slane %v312, %v338
    %v341 = vadd.f32 %v334, %v339
    %v342 = vpack.c.bf16 %v341, %v341
    %v343 = vld [vmem:[%s5] sm:$0xf]
    %v344 = vld [vmem:[%s5 + $0x4] sm:$0xf]
    %v345 = vld [vmem:[%s5 + $0x8] sm:$0xf]
    %v346 = vld [vmem:[%s5 + $0xc] sm:$0xf]
    %v347 = vld [vmem:[%s6] sm:$0xff]
    %v348 = vld [vmem:[%s6 + $0x8] sm:$0xff]
    %v349 = vld [vmem:[%s6 + $0x10] sm:$0xff]
    %v350 = vld [vmem:[%s6 + $0x18] sm:$0xff]
    %v355 = vunpack.c.l.b16 %v343
    %v356 = vunpack.c.l.b16 %v344
    %v357 = vunpack.c.l.b16 %v345
    %v358 = vunpack.c.l.b16 %v346
    %v359 = vpack.c.b16 %v356, %v355
    %v360 = vpack.c.b16 %v358, %v357
    %vm361 = vcmask 64512
    %v363 = vsel %vm361, %v359, 0
    %v366 = vsel %vm361, %v360, 0
    %vm368 = vcmask 1043456
    %v370 = vsel %vm368, %v342, 0
    %372 = vmatprep.subr.bf16.mxu0 0
    %373 = vmatpush1.bf16.msra.mxu0 0
    %374 = vmatprep.subr.bf16.mxu0 0
    %375 = vmatpush1.bf16.msra.mxu0 0
    %376 = vmatprep.subr.bf16.mxu0 0
    %377 = vmatpush1.bf16.msra.mxu0 0
    %378 = vmatprep.subr.bf16.mxu0 0
    %379 = vmatpush1.bf16.msra.mxu0 0
    %380 = vmatprep.subr.bf16.mxu0 0
    %381 = vmatpush1.bf16.msra.mxu0 0
    %382 = vmatprep.subr.bf16.mxu0 0
    %383 = vmatpush1.bf16.msra.mxu0 0
    %384 = vmatprep.subr.bf16.mxu0 0
    %385 = vmatpush1.bf16.msra.mxu0 0
    %386 = vmatprep.subr.bf16.mxu0 0
    %387 = vmatpush1.bf16.msra.mxu0 %v370
    %388 = vmatprep.subr.bf16.mxu0 0
    %389 = vmatpush2.bf16.msra.mxu0 0
    %390 = vmatprep.subr.bf16.mxu0 0
    %391 = vmatpush2.bf16.msra.mxu0 0
    %392 = vmatprep.subr.bf16.mxu0 0
    %393 = vmatpush2.bf16.msra.mxu0 0
    %394 = vmatprep.subr.bf16.mxu0 0
    %395 = vmatpush2.bf16.msra.mxu0 0
    %396 = vmatprep.subr.bf16.mxu0 0
    %397 = vmatpush2.bf16.msra.mxu0 0
    %398 = vmatprep.subr.bf16.mxu0 0
    %399 = vmatpush2.bf16.msra.mxu0 0
    %400 = vmatprep.subr.bf16.mxu0 0
    %401 = vmatpush2.bf16.msra.mxu0 0
    %402 = vmatprep.subr.bf16.mxu0 0
    %403 = vmatpush2.bf16.msra.mxu0 0
    %404 = vmatprep.mubr.bf16.mxu0 0
    %405 = vmatmul.mubr.bf16.gmra.mxu0 %v363
    %v406 = vpop.f32.mrf.mxu0
    %v407 = vadd.f32 %v347, %v406
    %v408 = vpop.f32.mrf.mxu0
    %v409 = vpop.f32.mrf.mxu0
    %v410 = vadd.f32 %v348, %v409
    %v411 = vpop.f32.mrf.mxu0
    %412 = vmatprep.mubr.bf16.mxu0 0
    %413 = vmatmul.mubr.bf16.gmra.mxu0 %v366
    %v414 = vpop.f32.mrf.mxu0
    %v415 = vadd.f32 %v349, %v414
    %v416 = vpop.f32.mrf.mxu0
    %v417 = vpop.f32.mrf.mxu0
    %v418 = vadd.f32 %v350, %v417
    %v419 = vpop.f32.mrf.mxu0
    %420 = vdwg.mxu0
    %v421 = vmul.f32 %v407, %v407
    %v422 = vmul.f32 %v410, %v410
    %v423 = vmul.f32 %v415, %v415
    %v424 = vmul.f32 %v418, %v418
    %v425 = vmul.f32 %v407, %v421
    %v426 = vmul.f32 %v410, %v422
    %v427 = vmul.f32 %v415, %v423
    %v428 = vmul.f32 %v418, %v424
    %v429 = vmul.f32 %v425, 0.044715
    %v430 = vmul.f32 %v426, 0.044715
    %v431 = vmul.f32 %v427, 0.044715
    %v432 = vmul.f32 %v428, 0.044715
    %v433 = vadd.f32 %v407, %v429
    %v434 = vadd.f32 %v410, %v430
    %v435 = vadd.f32 %v415, %v431
    %v436 = vadd.f32 %v418, %v432
    %v437 = vmul.f32 %v433, 0.7978846
    %v438 = vmul.f32 %v434, 0.7978846
    %v439 = vmul.f32 %v435, 0.7978846
    %v440 = vmul.f32 %v436, 0.7978846
    %v441 = vtanh.pop %v437
    %v442 = vtanh.pop %v438
    %v443 = vtanh.pop %v439
    %v444 = vtanh.pop %v440
    %v445 = vadd.f32 %v441, 1.0
    %v446 = vadd.f32 %v442, 1.0
    %v447 = vadd.f32 %v443, 1.0
    %v448 = vadd.f32 %v444, 1.0
    %v449 = vmul.f32 %v445, 0.5
    %v450 = vmul.f32 %v446, 0.5
    %v451 = vmul.f32 %v447, 0.5
    %v452 = vmul.f32 %v448, 0.5
    %v453 = vmul.f32 %v407, %v449
    %v454 = vmul.f32 %v410, %v450
    %v455 = vmul.f32 %v415, %v451
    %v456 = vmul.f32 %v418, %v452
    %v457 = vpack.c.bf16 %v454, %v453
    %v458 = vpack.c.bf16 %v456, %v455
    %v459 = vld [vmem:[#allocation8] sm:$0xf]
    %v460 = vld [vmem:[#allocation10] sm:$0xff]
    %vm461 = vcmask 261120
    %v463 = vsel %vm461, %v459, 0
    %465 = vmatprep.subr.bf16.mxu0 0
    %466 = vmatpush1.bf16.msra.mxu0 0
    %467 = vmatprep.subr.bf16.mxu0 0
    %468 = vmatpush1.bf16.msra.mxu0 0
    %469 = vmatprep.subr.bf16.mxu0 0
    %470 = vmatpush1.bf16.msra.mxu0 0
    %471 = vmatprep.subr.bf16.mxu0 0
    %472 = vmatpush1.bf16.msra.mxu0 0
    %473 = vmatprep.subr.bf16.mxu0 0
    %474 = vmatpush1.bf16.msra.mxu0 0
    %475 = vmatprep.subr.bf16.mxu0 0
    %476 = vmatpush1.bf16.msra.mxu0 0
    %477 = vmatprep.subr.bf16.mxu0 0
    %478 = vmatpush1.bf16.msra.mxu0 %v458
    %479 = vmatprep.subr.bf16.mxu0 0
    %480 = vmatpush1.bf16.msra.mxu0 %v457
    %481 = vmatprep.subr.bf16.mxu0 0
    %482 = vmatpush2.bf16.msra.mxu0 0
    %483 = vmatprep.subr.bf16.mxu0 0
    %484 = vmatpush2.bf16.msra.mxu0 0
    %485 = vmatprep.subr.bf16.mxu0 0
    %486 = vmatpush2.bf16.msra.mxu0 0
    %487 = vmatprep.subr.bf16.mxu0 0
    %488 = vmatpush2.bf16.msra.mxu0 0
    %489 = vmatprep.subr.bf16.mxu0 0
    %490 = vmatpush2.bf16.msra.mxu0 0
    %491 = vmatprep.subr.bf16.mxu0 0
    %492 = vmatpush2.bf16.msra.mxu0 0
    %493 = vmatprep.subr.bf16.mxu0 0
    %494 = vmatpush2.bf16.msra.mxu0 0
    %495 = vmatprep.subr.bf16.mxu0 0
    %496 = vmatpush2.bf16.msra.mxu0 0
    %497 = vmatprep.mubr.bf16.mxu0 0
    %498 = vmatmul.mubr.bf16.gmra.mxu0 %v463
    %v499 = vpop.f32.mrf.mxu0
    %v500 = vadd.f32 %v460, %v499
    %v501 = vpop.f32.mrf.mxu0
    %v502 = vpop.f32.mrf.mxu0
    %v503 = vpop.f32.mrf.mxu0
    %504 = vdwg.mxu0
    %v505 = vadd.f32 %v306, %v500
    %v506 = vld [vmem:[#allocation11] sm:$0x1]
    %v507 = vld [vmem:[#allocation13] sm:$0x1]
    %508 = vadd.xlane.f32.xlu0 %v505
    %v509 = vpop.xlane.xlu0 %508
    %v510 = vmul.f32 %v509, %v315
    %v511 = vmul.f32 %v505, %v505
    %512 = vadd.xlane.f32.xlu0 %v511
    %v513 = vpop.xlane.xlu0 %512
    %v514 = vmul.f32 %v513, %v315
    %v515 = vmul.f32 %v510, %v510
    %v516 = vsub.f32 %v514, %v515
    %v517 = vmax.f32 %v516, 0.0
    %v518 = vsub.f32 %v505, %v510
    %v519 = vadd.f32 %v517, 1e-05
    %v520 = vrsqrt.pop %v519
    %v521 = vmul.f32 %v518, %v520
    %v523 = vlaneseq
    %v524 = vshrl.u32 %v523, 7
    %v525 = vsub.s32 0, %v524
    %v526 = vrot.slane %v506, %v525
    %v528 = vmul.f32 %v521, %v526
    %v530 = vlaneseq
    %v531 = vshrl.u32 %v530, 7
    %v532 = vsub.s32 0, %v531
    %v533 = vrot.slane %v507, %v532
    %v535 = vadd.f32 %v528, %v533
    %v536 = vpack.c.bf16 %v535, %v535
    %v537 = vld [vmem:[%s11] sm:$0xf]
    %v538 = vld [vmem:[%s11 + $0x4] sm:$0xf]
    %v539 = vld [vmem:[%s11 + $0x8] sm:$0xf]
    %v540 = vld [vmem:[%s11 + $0xc] sm:$0xf]
    %v541 = vld [vmem:[%s11 + $0x10] sm:$0xf]
    %v542 = vld [vmem:[%s11 + $0x14] sm:$0xf]
    %v543 = vld [vmem:[%s11 + $0x18] sm:$0xf]
    %v544 = vld [vmem:[%s11 + $0x1c] sm:$0xf]
    %v545 = vld [vmem:[%s11 + $0x20] sm:$0xf]
    %v546 = vld [vmem:[%s11 + $0x24] sm:$0xf]
    %v547 = vld [vmem:[%s11 + $0x28] sm:$0xf]
    %v548 = vld [vmem:[%s11 + $0x2c] sm:$0xf]
    %v549 = vld [vmem:[%s11 + $0x30] sm:$0xf]
    %v550 = vld [vmem:[%s11 + $0x34] sm:$0xf]
    %v551 = vld [vmem:[%s11 + $0x38] sm:$0xf]
    %v552 = vld [vmem:[%s11 + $0x3c] sm:$0xf]
    %v553 = vld [vmem:[#allocation14] sm:$0x1]
    %v555 = vlaneseq
    %v556 = vshrl.u32 %v555, 7
    %v557 = vsub.s32 0, %v556
    %v558 = vrot.slane %v553, %v557
    %v576 = vunpack.c.l.b16 %v537
    %v577 = vunpack.c.l.b16 %v538
    %v578 = vunpack.c.l.b16 %v539
    %v579 = vunpack.c.l.b16 %v540
    %v580 = vunpack.c.l.b16 %v541
    %v581 = vunpack.c.l.b16 %v542
    %v582 = vunpack.c.l.b16 %v543
    %v583 = vunpack.c.l.b16 %v544
    %v584 = vunpack.c.l.b16 %v545
    %v585 = vunpack.c.l.b16 %v546
    %v586 = vunpack.c.l.b16 %v547
    %v587 = vunpack.c.l.b16 %v548
    %v588 = vunpack.c.l.b16 %v549
    %v589 = vunpack.c.l.b16 %v550
    %v590 = vunpack.c.l.b16 %v551
    %v591 = vunpack.c.l.b16 %v552
    %v592 = vpack.c.b16 %v577, %v576
    %v593 = vpack.c.b16 %v579, %v578
    %v594 = vpack.c.b16 %v581, %v580
    %v595 = vpack.c.b16 %v583, %v582
    %v596 = vpack.c.b16 %v585, %v584
    %v597 = vpack.c.b16 %v587, %v586
    %v598 = vpack.c.b16 %v589, %v588
    %v599 = vpack.c.b16 %v591, %v590
    %608 = vmatprep.subr.bf16.mxu0 0
    %609 = vmatpush1.bf16.msra.mxu0 %v599
    %610 = vmatprep.subr.bf16.mxu0 0
    %611 = vmatpush1.bf16.msra.mxu0 %v598
    %612 = vmatprep.subr.bf16.mxu0 0
    %613 = vmatpush1.bf16.msra.mxu0 %v597
    %614 = vmatprep.subr.bf16.mxu0 0
    %615 = vmatpush1.bf16.msra.mxu0 %v596
    %616 = vmatprep.subr.bf16.mxu0 0
    %617 = vmatpush1.bf16.msra.mxu0 %v595
    %618 = vmatprep.subr.bf16.mxu0 0
    %619 = vmatpush1.bf16.msra.mxu0 %v594
    %620 = vmatprep.subr.bf16.mxu0 0
    %621 = vmatpush1.bf16.msra.mxu0 %v593
    %622 = vmatprep.subr.bf16.mxu0 0
    %623 = vmatpush1.bf16.msra.mxu0 %v592
    %624 = vmatprep.subr.bf16.mxu0 0
    %625 = vmatpush2.bf16.msra.mxu0 0
    %626 = vmatprep.subr.bf16.mxu0 0
    %627 = vmatpush2.bf16.msra.mxu0 0
    %628 = vmatprep.subr.bf16.mxu0 0
    %629 = vmatpush2.bf16.msra.mxu0 0
    %630 = vmatprep.subr.bf16.mxu0 0
    %631 = vmatpush2.bf16.msra.mxu0 0
    %632 = vmatprep.subr.bf16.mxu0 0
    %633 = vmatpush2.bf16.msra.mxu0 0
    %634 = vmatprep.subr.bf16.mxu0 0
    %635 = vmatpush2.bf16.msra.mxu0 0
    %636 = vmatprep.subr.bf16.mxu0 0
    %637 = vmatpush2.bf16.msra.mxu0 0
    %638 = vmatprep.subr.bf16.mxu0 0
    %639 = vmatpush2.bf16.msra.mxu0 0
    %640 = vmatprep.mubr.bf16.mxu0 0
    %641 = vmatmul.mubr.bf16.gmra.mxu0 %v536
    %v642 = vpop.f32.mrf.mxu0
    %v643 = vadd.f32 %v558, %v642
    %v644 = vpop.f32.mrf.mxu0
    %v645 = vpop.f32.mrf.mxu0
    %v646 = vpop.f32.mrf.mxu0
    %647 = vdwg.mxu0
    %v648 = vmul.f32 %v643, %v643
    %v649 = vmul.f32 %v643, %v648
    %v650 = vmul.f32 %v649, 0.044715
    %v651 = vadd.f32 %v643, %v650
    %v652 = vmul.f32 %v651, 0.7978846
    %v653 = vtanh.pop %v652
    %v654 = vadd.f32 %v653, 1.0
    %v655 = vmul.f32 %v654, 0.5
    %v656 = vmul.f32 %v643, %v655
    %v657 = vpack.c.bf16 %v656, %v656
    %v658 = vld [vmem:[%s13] sm:$0xf]
    %v659 = vld [vmem:[%s13 + $0x4] sm:$0xf]
    %v660 = vld [vmem:[%s13 + $0x8] sm:$0xf]
    %v661 = vld [vmem:[%s13 + $0xc] sm:$0xf]
    %v662 = vld [vmem:[%s13 + $0x10] sm:$0xf]
    %v663 = vld [vmem:[%s13 + $0x14] sm:$0xf]
    %v664 = vld [vmem:[%s13 + $0x18] sm:$0xf]
    %v665 = vld [vmem:[%s13 + $0x1c] sm:$0xf]
    %v666 = vld [vmem:[#allocation16] sm:$0x1]
    %v668 = vlaneseq
    %v669 = vshrl.u32 %v668, 7
    %v670 = vsub.s32 0, %v669
    %v671 = vrot.slane %v666, %v670
    %v681 = vunpack.c.l.b16 %v658
    %v682 = vunpack.c.l.b16 %v659
    %v683 = vunpack.c.l.b16 %v660
    %v684 = vunpack.c.l.b16 %v661
    %v685 = vunpack.c.l.b16 %v662
    %v686 = vunpack.c.l.b16 %v663
    %v687 = vunpack.c.l.b16 %v664
    %v688 = vunpack.c.l.b16 %v665
    %v689 = vpack.c.b16 %v682, %v681
    %v690 = vpack.c.b16 %v684, %v683
    %v691 = vpack.c.b16 %v686, %v685
    %v692 = vpack.c.b16 %v688, %v687
    %vm697 = vcmask 523264
    %v699 = vsel %vm697, %v657, 0
    %701 = vmatprep.subr.bf16.mxu0 0
    %702 = vmatpush1.bf16.msra.mxu0 0
    %703 = vmatprep.subr.bf16.mxu0 0
    %704 = vmatpush1.bf16.msra.mxu0 0
    %705 = vmatprep.subr.bf16.mxu0 0
    %706 = vmatpush1.bf16.msra.mxu0 0
    %707 = vmatprep.subr.bf16.mxu0 0
    %708 = vmatpush1.bf16.msra.mxu0 0
    %709 = vmatprep.subr.bf16.mxu0 0
    %710 = vmatpush1.bf16.msra.mxu0 %v692
    %711 = vmatprep.subr.bf16.mxu0 0
    %712 = vmatpush1.bf16.msra.mxu0 %v691
    %713 = vmatprep.subr.bf16.mxu0 0
    %714 = vmatpush1.bf16.msra.mxu0 %v690
    %715 = vmatprep.subr.bf16.mxu0 0
    %716 = vmatpush1.bf16.msra.mxu0 %v689
    %717 = vmatprep.subr.bf16.mxu0 0
    %718 = vmatpush2.bf16.msra.mxu0 0
    %719 = vmatprep.subr.bf16.mxu0 0
    %720 = vmatpush2.bf16.msra.mxu0 0
    %721 = vmatprep.subr.bf16.mxu0 0
    %722 = vmatpush2.bf16.msra.mxu0 0
    %723 = vmatprep.subr.bf16.mxu0 0
    %724 = vmatpush2.bf16.msra.mxu0 0
    %725 = vmatprep.subr.bf16.mxu0 0
    %726 = vmatpush2.bf16.msra.mxu0 0
    %727 = vmatprep.subr.bf16.mxu0 0
    %728 = vmatpush2.bf16.msra.mxu0 0
    %729 = vmatprep.subr.bf16.mxu0 0
    %730 = vmatpush2.bf16.msra.mxu0 0
    %731 = vmatprep.subr.bf16.mxu0 0
    %732 = vmatpush2.bf16.msra.mxu0 0
    %733 = vmatprep.mubr.bf16.mxu0 0
    %734 = vmatmul.mubr.bf16.gmra.mxu0 %v699
    %v735 = vpop.f32.mrf.mxu0
    %v736 = vadd.f32 %v671, %v735
    %v737 = vpop.f32.mrf.mxu0
    %v738 = vpop.f32.mrf.mxu0
    %v739 = vpop.f32.mrf.mxu0
    %740 = vdwg.mxu0
    %v741 = vadd.f32 %v505, %v736
    %s742 = scalar_lea.vmem [#allocation5], 1
    %v743 = vld [vmem:[%s742] sm:$0x1]
    %s744 = scalar_lea.vmem [#allocation7], 1
    %v745 = vld [vmem:[%s744] sm:$0x1]
    %746 = vadd.xlane.f32.xlu0 %v741
    %v747 = vpop.xlane.xlu0 %746
    %v748 = vmul.f32 %v747, %v315
    %v749 = vmul.f32 %v741, %v741
    %750 = vadd.xlane.f32.xlu0 %v749
    %v751 = vpop.xlane.xlu0 %750
    %v752 = vmul.f32 %v751, %v315
    %v753 = vmul.f32 %v748, %v748
    %v754 = vsub.f32 %v752, %v753
    %v755 = vmax.f32 %v754, 0.0
    %v756 = vsub.f32 %v741, %v748
    %v757 = vadd.f32 %v755, 1e-05
    %v758 = vrsqrt.pop %v757
    %v759 = vmul.f32 %v756, %v758
    %v761 = vlaneseq
    %v762 = vshrl.u32 %v761, 7
    %v763 = vsub.s32 0, %v762
    %v764 = vrot.slane %v743, %v763
    %v766 = vmul.f32 %v759, %v764
    %v768 = vlaneseq
    %v769 = vshrl.u32 %v768, 7
    %v770 = vsub.s32 0, %v769
    %v771 = vrot.slane %v745, %v770
    %v773 = vadd.f32 %v766, %v771
    %v774 = vpack.c.bf16 %v773, %v773
    %s775 = scalar_lea.vmem %s5, 16
    %v776 = vld [vmem:[%s775] sm:$0xf]
    %v777 = vld [vmem:[%s775 + $0x4] sm:$0xf]
    %v778 = vld [vmem:[%s775 + $0x8] sm:$0xf]
    %v779 = vld [vmem:[%s775 + $0xc] sm:$0xf]
    %s780 = scalar_lea.vmem %s6, 32
    %v781 = vld [vmem:[%s780] sm:$0xff]
    %v782 = vld [vmem:[%s780 + $0x8] sm:$0xff]
    %v783 = vld [vmem:[%s780 + $0x10] sm:$0xff]
    %v784 = vld [vmem:[%s780 + $0x18] sm:$0xff]
    %v789 = vunpack.c.l.b16 %v776
    %v790 = vunpack.c.l.b16 %v777
    %v791 = vunpack.c.l.b16 %v778
    %v792 = vunpack.c.l.b16 %v779
    %v793 = vpack.c.b16 %v790, %v789
    %v794 = vpack.c.b16 %v792, %v791
    %v796 = vsel %vm361, %v793, 0
    %v799 = vsel %vm361, %v794, 0
    %v802 = vsel %vm368, %v774, 0
    %804 = vmatprep.subr.bf16.mxu0 0
    %805 = vmatpush1.bf16.msra.mxu0 0
    %806 = vmatprep.subr.bf16.mxu0 0
    %807 = vmatpush1.bf16.msra.mxu0 0
    %808 = vmatprep.subr.bf16.mxu0 0
    %809 = vmatpush1.bf16.msra.mxu0 0
    %810 = vmatprep.subr.bf16.mxu0 0
    %811 = vmatpush1.bf16.msra.mxu0 0
    %812 = vmatprep.subr.bf16.mxu0 0
    %813 = vmatpush1.bf16.msra.mxu0 0
    %814 = vmatprep.subr.bf16.mxu0 0
    %815 = vmatpush1.bf16.msra.mxu0 0
    %816 = vmatprep.subr.bf16.mxu0 0
    %817 = vmatpush1.bf16.msra.mxu0 0
    %818 = vmatprep.subr.bf16.mxu0 0
    %819 = vmatpush1.bf16.msra.mxu0 %v802
    %820 = vmatprep.subr.bf16.mxu0 0
    %821 = vmatpush2.bf16.msra.mxu0 0
    %822 = vmatprep.subr.bf16.mxu0 0
    %823 = vmatpush2.bf16.msra.mxu0 0
    %824 = vmatprep.subr.bf16.mxu0 0
    %825 = vmatpush2.bf16.msra.mxu0 0
    %826 = vmatprep.subr.bf16.mxu0 0
    %827 = vmatpush2.bf16.msra.mxu0 0
    %828 = vmatprep.subr.bf16.mxu0 0
    %829 = vmatpush2.bf16.msra.mxu0 0
    %830 = vmatprep.subr.bf16.mxu0 0
    %831 = vmatpush2.bf16.msra.mxu0 0
    %832 = vmatprep.subr.bf16.mxu0 0
    %833 = vmatpush2.bf16.msra.mxu0 0
    %834 = vmatprep.subr.bf16.mxu0 0
    %835 = vmatpush2.bf16.msra.mxu0 0
    %836 = vmatprep.mubr.bf16.mxu0 0
    %837 = vmatmul.mubr.bf16.gmra.mxu0 %v796
    %v838 = vpop.f32.mrf.mxu0
    %v839 = vadd.f32 %v781, %v838
    %v840 = vpop.f32.mrf.mxu0
    %v841 = vpop.f32.mrf.mxu0
    %v842 = vadd.f32 %v782, %v841
    %v843 = vpop.f32.mrf.mxu0
    %844 = vmatprep.mubr.bf16.mxu0 0
    %845 = vmatmul.mubr.bf16.gmra.mxu0 %v799
    %v846 = vpop.f32.mrf.mxu0
    %v847 = vadd.f32 %v783, %v846
    %v848 = vpop.f32.mrf.mxu0
    %v849 = vpop.f32.mrf.mxu0
    %v850 = vadd.f32 %v784, %v849
    %v851 = vpop.f32.mrf.mxu0
    %852 = vdwg.mxu0
    %v853 = vmul.f32 %v839, %v839
    %v854 = vmul.f32 %v842, %v842
    %v855 = vmul.f32 %v847, %v847
    %v856 = vmul.f32 %v850, %v850
    %v857 = vmul.f32 %v839, %v853
    %v858 = vmul.f32 %v842, %v854
    %v859 = vmul.f32 %v847, %v855
    %v860 = vmul.f32 %v850, %v856
    %v861 = vmul.f32 %v857, 0.044715
    %v862 = vmul.f32 %v858, 0.044715
    %v863 = vmul.f32 %v859, 0.044715
    %v864 = vmul.f32 %v860, 0.044715
    %v865 = vadd.f32 %v839, %v861
    %v866 = vadd.f32 %v842, %v862
    %v867 = vadd.f32 %v847, %v863
    %v868 = vadd.f32 %v850, %v864
    %v869 = vmul.f32 %v865, 0.7978846
    %v870 = vmul.f32 %v866, 0.7978846
    %v871 = vmul.f32 %v867, 0.7978846
    %v872 = vmul.f32 %v868, 0.7978846
    %v873 = vtanh.pop %v869
    %v874 = vtanh.pop %v870
    %v875 = vtanh.pop %v871
    %v876 = vtanh.pop %v872
    %v877 = vadd.f32 %v873, 1.0
    %v878 = vadd.f32 %v874, 1.0
    %v879 = vadd.f32 %v875, 1.0
    %v880 = vadd.f32 %v876, 1.0
    %v881 = vmul.f32 %v877, 0.5
    %v882 = vmul.f32 %v878, 0.5
    %v883 = vmul.f32 %v879, 0.5
    %v884 = vmul.f32 %v880, 0.5
    %v885 = vmul.f32 %v839, %v881
    %v886 = vmul.f32 %v842, %v882
    %v887 = vmul.f32 %v847, %v883
    %v888 = vmul.f32 %v850, %v884
    %v889 = vpack.c.bf16 %v886, %v885
    %v890 = vpack.c.bf16 %v888, %v887
    %s891 = scalar_lea.vmem [#allocation8], 4
    %v892 = vld [vmem:[%s891] sm:$0xf]
    %s893 = scalar_lea.vmem [#allocation10], 8
    %v894 = vld [vmem:[%s893] sm:$0xff]
    %v896 = vsel %vm461, %v892, 0
    %898 = vmatprep.subr.bf16.mxu0 0
    %899 = vmatpush1.bf16.msra.mxu0 0
    %900 = vmatprep.subr.bf16.mxu0 0
    %901 = vmatpush1.bf16.msra.mxu0 0
    %902 = vmatprep.subr.bf16.mxu0 0
    %903 = vmatpush1.bf16.msra.mxu0 0
    %904 = vmatprep.subr.bf16.mxu0 0
    %905 = vmatpush1.bf16.msra.mxu0 0
    %906 = vmatprep.subr.bf16.mxu0 0
    %907 = vmatpush1.bf16.msra.mxu0 0
    %908 = vmatprep.subr.bf16.mxu0 0
    %909 = vmatpush1.bf16.msra.mxu0 0
    %910 = vmatprep.subr.bf16.mxu0 0
    %911 = vmatpush1.bf16.msra.mxu0 %v890
    %912 = vmatprep.subr.bf16.mxu0 0
    %913 = vmatpush1.bf16.msra.mxu0 %v889
    %914 = vmatprep.subr.bf16.mxu0 0
    %915 = vmatpush2.bf16.msra.mxu0 0
    %916 = vmatprep.subr.bf16.mxu0 0
    %917 = vmatpush2.bf16.msra.mxu0 0
    %918 = vmatprep.subr.bf16.mxu0 0
    %919 = vmatpush2.bf16.msra.mxu0 0
    %920 = vmatprep.subr.bf16.mxu0 0
    %921 = vmatpush2.bf16.msra.mxu0 0
    %922 = vmatprep.subr.bf16.mxu0 0
    %923 = vmatpush2.bf16.msra.mxu0 0
    %924 = vmatprep.subr.bf16.mxu0 0
    %925 = vmatpush2.bf16.msra.mxu0 0
    %926 = vmatprep.subr.bf16.mxu0 0
    %927 = vmatpush2.bf16.msra.mxu0 0
    %928 = vmatprep.subr.bf16.mxu0 0
    %929 = vmatpush2.bf16.msra.mxu0 0
    %930 = vmatprep.mubr.bf16.mxu0 0
    %931 = vmatmul.mubr.bf16.gmra.mxu0 %v896
    %v932 = vpop.f32.mrf.mxu0
    %v933 = vadd.f32 %v894, %v932
    %v934 = vpop.f32.mrf.mxu0
    %v935 = vpop.f32.mrf.mxu0
    %v936 = vpop.f32.mrf.mxu0
    %937 = vdwg.mxu0
    %v938 = vadd.f32 %v741, %v933
    %s939 = scalar_lea.vmem [#allocation11], 1
    %v940 = vld [vmem:[%s939] sm:$0x1]
    %s941 = scalar_lea.vmem [#allocation13], 1
    %v942 = vld [vmem:[%s941] sm:$0x1]
    %943 = vadd.xlane.f32.xlu0 %v938
    %v944 = vpop.xlane.xlu0 %943
    %v945 = vmul.f32 %v944, %v315
    %v946 = vmul.f32 %v938, %v938
    %947 = vadd.xlane.f32.xlu0 %v946
    %v948 = vpop.xlane.xlu0 %947
    %v949 = vmul.f32 %v948, %v315
    %v950 = vmul.f32 %v945, %v945
    %v951 = vsub.f32 %v949, %v950
    %v952 = vmax.f32 %v951, 0.0
    %v953 = vsub.f32 %v938, %v945
    %v954 = vadd.f32 %v952, 1e-05
    %v955 = vrsqrt.pop %v954
    %v956 = vmul.f32 %v953, %v955
    %v958 = vlaneseq
    %v959 = vshrl.u32 %v958, 7
    %v960 = vsub.s32 0, %v959
    %v961 = vrot.slane %v940, %v960
    %v963 = vmul.f32 %v956, %v961
    %v965 = vlaneseq
    %v966 = vshrl.u32 %v965, 7
    %v967 = vsub.s32 0, %v966
    %v968 = vrot.slane %v942, %v967
    %v970 = vadd.f32 %v963, %v968
    %v971 = vpack.c.bf16 %v970, %v970
    %s972 = scalar_lea.vmem %s11, 64
    %v973 = vld [vmem:[%s972] sm:$0xf]
    %v974 = vld [vmem:[%s972 + $0x4] sm:$0xf]
    %v975 = vld [vmem:[%s972 + $0x8] sm:$0xf]
    %v976 = vld [vmem:[%s972 + $0xc] sm:$0xf]
    %v977 = vld [vmem:[%s972 + $0x10] sm:$0xf]
    %v978 = vld [vmem:[%s972 + $0x14] sm:$0xf]
    %v979 = vld [vmem:[%s972 + $0x18] sm:$0xf]
    %v980 = vld [vmem:[%s972 + $0x1c] sm:$0xf]
    %v981 = vld [vmem:[%s972 + $0x20] sm:$0xf]
    %v982 = vld [vmem:[%s972 + $0x24] sm:$0xf]
    %v983 = vld [vmem:[%s972 + $0x28] sm:$0xf]
    %v984 = vld [vmem:[%s972 + $0x2c] sm:$0xf]
    %v985 = vld [vmem:[%s972 + $0x30] sm:$0xf]
    %v986 = vld [vmem:[%s972 + $0x34] sm:$0xf]
    %v987 = vld [vmem:[%s972 + $0x38] sm:$0xf]
    %v988 = vld [vmem:[%s972 + $0x3c] sm:$0xf]
    %s989 = scalar_lea.vmem [#allocation14], 1
    %v990 = vld [vmem:[%s989] sm:$0x1]
    %v992 = vlaneseq
    %v993 = vshrl.u32 %v992, 7
    %v994 = vsub.s32 0, %v993
    %v995 = vrot.slane %v990, %v994
    %v1013 = vunpack.c.l.b16 %v973
    %v1014 = vunpack.c.l.b16 %v974
    %v1015 = vunpack.c.l.b16 %v975
    %v1016 = vunpack.c.l.b16 %v976
    %v1017 = vunpack.c.l.b16 %v977
    %v1018 = vunpack.c.l.b16 %v978
    %v1019 = vunpack.c.l.b16 %v979
    %v1020 = vunpack.c.l.b16 %v980
    %v1021 = vunpack.c.l.b16 %v981
    %v1022 = vunpack.c.l.b16 %v982
    %v1023 = vunpack.c.l.b16 %v983
    %v1024 = vunpack.c.l.b16 %v984
    %v1025 = vunpack.c.l.b16 %v985
    %v1026 = vunpack.c.l.b16 %v986
    %v1027 = vunpack.c.l.b16 %v987
    %v1028 = vunpack.c.l.b16 %v988
    %v1029 = vpack.c.b16 %v1014, %v1013
    %v1030 = vpack.c.b16 %v1016, %v1015
    %v1031 = vpack.c.b16 %v1018, %v1017
    %v1032 = vpack.c.b16 %v1020, %v1019
    %v1033 = vpack.c.b16 %v1022, %v1021
    %v1034 = vpack.c.b16 %v1024, %v1023
    %v1035 = vpack.c.b16 %v1026, %v1025
    %v1036 = vpack.c.b16 %v1028, %v1027
    %1045 = vmatprep.subr.bf16.mxu0 0
    %1046 = vmatpush1.bf16.msra.mxu0 %v1036
    %1047 = vmatprep.subr.bf16.mxu0 0
    %1048 = vmatpush1.bf16.msra.mxu0 %v1035
    %1049 = vmatprep.subr.bf16.mxu0 0
    %1050 = vmatpush1.bf16.msra.mxu0 %v1034
    %1051 = vmatprep.subr.bf16.mxu0 0
    %1052 = vmatpush1.bf16.msra.mxu0 %v1033
    %1053 = vmatprep.subr.bf16.mxu0 0
    %1054 = vmatpush1.bf16.msra.mxu0 %v1032
    %1055 = vmatprep.subr.bf16.mxu0 0
    %1056 = vmatpush1.bf16.msra.mxu0 %v1031
    %1057 = vmatprep.subr.bf16.mxu0 0
    %1058 = vmatpush1.bf16.msra.mxu0 %v1030
    %1059 = vmatprep.subr.bf16.mxu0 0
    %1060 = vmatpush1.bf16.msra.mxu0 %v1029
    %1061 = vmatprep.subr.bf16.mxu0 0
    %1062 = vmatpush2.bf16.msra.mxu0 0
    %1063 = vmatprep.subr.bf16.mxu0 0
    %1064 = vmatpush2.bf16.msra.mxu0 0
    %1065 = vmatprep.subr.bf16.mxu0 0
    %1066 = vmatpush2.bf16.msra.mxu0 0
    %1067 = vmatprep.subr.bf16.mxu0 0
    %1068 = vmatpush2.bf16.msra.mxu0 0
    %1069 = vmatprep.subr.bf16.mxu0 0
    %1070 = vmatpush2.bf16.msra.mxu0 0
    %1071 = vmatprep.subr.bf16.mxu0 0
    %1072 = vmatpush2.bf16.msra.mxu0 0
    %1073 = vmatprep.subr.bf16.mxu0 0
    %1074 = vmatpush2.bf16.msra.mxu0 0
    %1075 = vmatprep.subr.bf16.mxu0 0
    %1076 = vmatpush2.bf16.msra.mxu0 0
    %1077 = vmatprep.mubr.bf16.mxu0 0
    %1078 = vmatmul.mubr.bf16.gmra.mxu0 %v971
    %v1079 = vpop.f32.mrf.mxu0
    %v1080 = vadd.f32 %v995, %v1079
    %v1081 = vpop.f32.mrf.mxu0
    %v1082 = vpop.f32.mrf.mxu0
    %v1083 = vpop.f32.mrf.mxu0
    %1084 = vdwg.mxu0
    %v1085 = vmul.f32 %v1080, %v1080
    %v1086 = vmul.f32 %v1080, %v1085
    %v1087 = vmul.f32 %v1086, 0.044715
    %v1088 = vadd.f32 %v1080, %v1087
    %v1089 = vmul.f32 %v1088, 0.7978846
    %v1090 = vtanh.pop %v1089
    %v1091 = vadd.f32 %v1090, 1.0
    %v1092 = vmul.f32 %v1091, 0.5
    %v1093 = vmul.f32 %v1080, %v1092
    %v1094 = vpack.c.bf16 %v1093, %v1093
    %s1095 = scalar_lea.vmem %s13, 32
    %v1096 = vld [vmem:[%s1095] sm:$0xf]
    %v1097 = vld [vmem:[%s1095 + $0x4] sm:$0xf]
    %v1098 = vld [vmem:[%s1095 + $0x8] sm:$0xf]
    %v1099 = vld [vmem:[%s1095 + $0xc] sm:$0xf]
    %v1100 = vld [vmem:[%s1095 + $0x10] sm:$0xf]
    %v1101 = vld [vmem:[%s1095 + $0x14] sm:$0xf]
    %v1102 = vld [vmem:[%s1095 + $0x18] sm:$0xf]
    %v1103 = vld [vmem:[%s1095 + $0x1c] sm:$0xf]
    %s1104 = scalar_lea.vmem [#allocation16], 1
    %v1105 = vld [vmem:[%s1104] sm:$0x1]
    %v1107 = vlaneseq
    %v1108 = vshrl.u32 %v1107, 7
    %v1109 = vsub.s32 0, %v1108
    %v1110 = vrot.slane %v1105, %v1109
    %v1120 = vunpack.c.l.b16 %v1096
    %v1121 = vunpack.c.l.b16 %v1097
    %v1122 = vunpack.c.l.b16 %v1098
    %v1123 = vunpack.c.l.b16 %v1099
    %v1124 = vunpack.c.l.b16 %v1100
    %v1125 = vunpack.c.l.b16 %v1101
    %v1126 = vunpack.c.l.b16 %v1102
    %v1127 = vunpack.c.l.b16 %v1103
    %v1128 = vpack.c.b16 %v1121, %v1120
    %v1129 = vpack.c.b16 %v1123, %v1122
    %v1130 = vpack.c.b16 %v1125, %v1124
    %v1131 = vpack.c.b16 %v1127, %v1126
    %v1137 = vsel %vm697, %v1094, 0
    %1139 = vmatprep.subr.bf16.mxu0 0
    %1140 = vmatpush1.bf16.msra.mxu0 0
    %1141 = vmatprep.subr.bf16.mxu0 0
    %1142 = vmatpush1.bf16.msra.mxu0 0
    %1143 = vmatprep.subr.bf16.mxu0 0
    %1144 = vmatpush1.bf16.msra.mxu0 0
    %1145 = vmatprep.subr.bf16.mxu0 0
    %1146 = vmatpush1.bf16.msra.mxu0 0
    %1147 = vmatprep.subr.bf16.mxu0 0
    %1148 = vmatpush1.bf16.msra.mxu0 %v1131
    %1149 = vmatprep.subr.bf16.mxu0 0
    %1150 = vmatpush1.bf16.msra.mxu0 %v1130
    %1151 = vmatprep.subr.bf16.mxu0 0
    %1152 = vmatpush1.bf16.msra.mxu0 %v1129
    %1153 = vmatprep.subr.bf16.mxu0 0
    %1154 = vmatpush1.bf16.msra.mxu0 %v1128
    %1155 = vmatprep.subr.bf16.mxu0 0
    %1156 = vmatpush2.bf16.msra.mxu0 0
    %1157 = vmatprep.subr.bf16.mxu0 0
    %1158 = vmatpush2.bf16.msra.mxu0 0
    %1159 = vmatprep.subr.bf16.mxu0 0
    %1160 = vmatpush2.bf16.msra.mxu0 0
    %1161 = vmatprep.subr.bf16.mxu0 0
    %1162 = vmatpush2.bf16.msra.mxu0 0
    %1163 = vmatprep.subr.bf16.mxu0 0
    %1164 = vmatpush2.bf16.msra.mxu0 0
    %1165 = vmatprep.subr.bf16.mxu0 0
    %1166 = vmatpush2.bf16.msra.mxu0 0
    %1167 = vmatprep.subr.bf16.mxu0 0
    %1168 = vmatpush2.bf16.msra.mxu0 0
    %1169 = vmatprep.subr.bf16.mxu0 0
    %1170 = vmatpush2.bf16.msra.mxu0 0
    %1171 = vmatprep.mubr.bf16.mxu0 0
    %1172 = vmatmul.mubr.bf16.gmra.mxu0 %v1137
    %v1173 = vpop.f32.mrf.mxu0
    %v1174 = vadd.f32 %v1110, %v1173
    %v1175 = vpop.f32.mrf.mxu0
    %v1176 = vpop.f32.mrf.mxu0
    %v1177 = vpop.f32.mrf.mxu0
    %1178 = vdwg.mxu0
    %v1179 = vadd.f32 %v938, %v1174
    %v1180 = vld [vmem:[#allocation17] sm:$0x1]
    %v1181 = vld [vmem:[%s16] sm:$0x1]
    %1182 = vadd.xlane.f32.xlu0 %v1179
    %v1183 = vpop.xlane.xlu0 %1182
    %v1184 = vmul.f32 %v1183, %v315
    %v1185 = vmul.f32 %v1179, %v1179
    %1186 = vadd.xlane.f32.xlu0 %v1185
    %v1187 = vpop.xlane.xlu0 %1186
    %v1188 = vmul.f32 %v1187, %v315
    %v1189 = vmul.f32 %v1184, %v1184
    %v1190 = vsub.f32 %v1188, %v1189
    %v1191 = vmax.f32 %v1190, 0.0
    %v1192 = vsub.f32 %v1179, %v1184
    %v1193 = vadd.f32 %v1191, 1e-05
    %v1194 = vrsqrt.pop %v1193
    %v1195 = vmul.f32 %v1192, %v1194
    %v1197 = vlaneseq
    %v1198 = vshrl.u32 %v1197, 7
    %v1199 = vsub.s32 0, %v1198
    %v1200 = vrot.slane %v1180, %v1199
    %v1202 = vmul.f32 %v1195, %v1200
    %v1204 = vlaneseq
    %v1205 = vshrl.u32 %v1204, 7
    %v1206 = vsub.s32 0, %v1205
    %v1207 = vrot.slane %v1181, %v1206
    %v1209 = vadd.f32 %v1202, %v1207
    %v1210 = vld [vmem:[%s17] sm:$0x3]
    %v1212 = vsel %vm361, %v1210, 0
    %1214 = vmatprep.subr.mxu0 0.0
    %1215 = vmatpush1.msra.mxu0 0.0
    %1216 = vmatprep.subr.mxu0 0.0
    %1217 = vmatpush1.msra.mxu0 0.0
    %1218 = vmatprep.subr.mxu0 0.0
    %1219 = vmatpush1.msra.mxu0 0.0
    %1220 = vmatprep.subr.mxu0 0.0
    %1221 = vmatpush1.msra.mxu0 0.0
    %1222 = vmatprep.subr.mxu0 0.0
    %1223 = vmatpush1.msra.mxu0 0.0
    %1224 = vmatprep.subr.mxu0 0.0
    %1225 = vmatpush1.msra.mxu0 0.0
    %1226 = vmatprep.subr.mxu0 0.0
    %1227 = vmatpush1.msra.mxu0 0.0
    %1228 = vmatprep.subr.mxu0 0.0
    %1229 = vmatpush1.msra.mxu0 0.0
    %1230 = vmatprep.subr.mxu0 0.0
    %1231 = vmatpush1.msra.mxu0 0.0
    %1232 = vmatprep.subr.mxu0 0.0
    %1233 = vmatpush1.msra.mxu0 0.0
    %1234 = vmatprep.subr.mxu0 0.0
    %1235 = vmatpush1.msra.mxu0 0.0
    %1236 = vmatprep.subr.mxu0 0.0
    %1237 = vmatpush1.msra.mxu0 0.0
    %1238 = vmatprep.subr.mxu0 0.0
    %1239 = vmatpush1.msra.mxu0 0.0
    %1240 = vmatprep.subr.mxu0 0.0
    %1241 = vmatpush1.msra.mxu0 0.0
    %1242 = vmatprep.subr.mxu0 0.0
    %1243 = vmatpush1.msra.mxu0 0.0
    %1244 = vmatprep.subr.mxu0 0.0
    %1245 = vmatpush1.msra.mxu0 %v1209
    %1246 = vmatprep.subr.mxu0 0.0
    %1247 = vmatpush2.msra.mxu0 0.0
    %1248 = vmatprep.subr.mxu0 0.0
    %1249 = vmatpush2.msra.mxu0 0.0
    %1250 = vmatprep.subr.mxu0 0.0
    %1251 = vmatpush2.msra.mxu0 0.0
    %1252 = vmatprep.subr.mxu0 0.0
    %1253 = vmatpush2.msra.mxu0 0.0
    %1254 = vmatprep.subr.mxu0 0.0
    %1255 = vmatpush2.msra.mxu0 0.0
    %1256 = vmatprep.subr.mxu0 0.0
    %1257 = vmatpush2.msra.mxu0 0.0
    %1258 = vmatprep.subr.mxu0 0.0
    %1259 = vmatpush2.msra.mxu0 0.0
    %1260 = vmatprep.subr.mxu0 0.0
    %1261 = vmatpush2.msra.mxu0 0.0
    %1262 = vmatprep.subr.mxu0 0.0
    %1263 = vmatpush2.msra.mxu0 0.0
    %1264 = vmatprep.subr.mxu0 0.0
    %1265 = vmatpush2.msra.mxu0 0.0
    %1266 = vmatprep.subr.mxu0 0.0
    %1267 = vmatpush2.msra.mxu0 0.0
    %1268 = vmatprep.subr.mxu0 0.0
    %1269 = vmatpush2.msra.mxu0 0.0
    %1270 = vmatprep.subr.mxu0 0.0
    %1271 = vmatpush2.msra.mxu0 0.0
    %1272 = vmatprep.subr.mxu0 0.0
    %1273 = vmatpush2.msra.mxu0 0.0
    %1274 = vmatprep.subr.mxu0 0.0
    %1275 = vmatpush2.msra.mxu0 0.0
    %1276 = vmatprep.subr.mxu0 0.0
    %1277 = vmatpush2.msra.mxu0 0.0
    %1278 = vmatprep.mubr.f32.mxu0 0.0
    %1279 = vmatmul.mubr.f32.gmra.mxu0 %v1212
    %v1280 = vpop.f32.mrf.mxu0
    %v1281 = vadd.f32 0.0, %v1280
    %v1282 = vpop.f32.mrf.mxu0
    %1283 = vdwg.mxu0
    %v1284 = vpack.c.bf16 %v1281, %v1281
    %v1285 = vld [vmem:[%s18] sm:$0xf]
    %v1286 = vld [vmem:[%s18 + $0x4] sm:$0xf]
    %v1287 = vld [vmem:[%s18 + $0x8] sm:$0xf]
    %v1288 = vld [vmem:[%s18 + $0xc] sm:$0xf]
    %v1289 = vld [vmem:[%s18 + $0x10] sm:$0xf]
    %v1290 = vld [vmem:[%s18 + $0x14] sm:$0xf]
    %v1291 = vld [vmem:[%s18 + $0x18] sm:$0xf]
    %v1292 = vld [vmem:[%s18 + $0x1c] sm:$0xf]
    %v1293 = vld [vmem:[%s18 + $0x20] sm:$0xf]
    %v1294 = vld [vmem:[%s18 + $0x24] sm:$0xf]
    %v1295 = vld [vmem:[%s18 + $0x28] sm:$0xf]
    %v1296 = vld [vmem:[%s18 + $0x2c] sm:$0xf]
    %v1297 = vld [vmem:[%s18 + $0x30] sm:$0xf]
    %v1298 = vld [vmem:[%s18 + $0x34] sm:$0xf]
    %v1299 = vld [vmem:[%s18 + $0x38] sm:$0xf]
    %v1300 = vld [vmem:[%s18 + $0x3c] sm:$0xf]
    %v1301 = vld [vmem:[%s19] sm:$0x1]
    %v1303 = vlaneseq
    %v1304 = vshrl.u32 %v1303, 7
    %v1305 = vsub.s32 0, %v1304
    %v1306 = vrot.slane %v1301, %v1305
    %v1324 = vunpack.c.l.b16 %v1285
    %v1325 = vunpack.c.l.b16 %v1286
    %v1326 = vunpack.c.l.b16 %v1287
    %v1327 = vunpack.c.l.b16 %v1288
    %v1328 = vunpack.c.l.b16 %v1289
    %v1329 = vunpack.c.l.b16 %v1290
    %v1330 = vunpack.c.l.b16 %v1291
    %v1331 = vunpack.c.l.b16 %v1292
    %v1332 = vunpack.c.l.b16 %v1293
    %v1333 = vunpack.c.l.b16 %v1294
    %v1334 = vunpack.c.l.b16 %v1295
    %v1335 = vunpack.c.l.b16 %v1296
    %v1336 = vunpack.c.l.b16 %v1297
    %v1337 = vunpack.c.l.b16 %v1298
    %v1338 = vunpack.c.l.b16 %v1299
    %v1339 = vunpack.c.l.b16 %v1300
    %v1340 = vpack.c.b16 %v1325, %v1324
    %v1341 = vpack.c.b16 %v1327, %v1326
    %v1342 = vpack.c.b16 %v1329, %v1328
    %v1343 = vpack.c.b16 %v1331, %v1330
    %v1344 = vpack.c.b16 %v1333, %v1332
    %v1345 = vpack.c.b16 %v1335, %v1334
    %v1346 = vpack.c.b16 %v1337, %v1336
    %v1347 = vpack.c.b16 %v1339, %v1338
    %1356 = vmatprep.subr.bf16.mxu0 0
    %1357 = vmatpush1.bf16.msra.mxu0 %v1347
    %1358 = vmatprep.subr.bf16.mxu0 0
    %1359 = vmatpush1.bf16.msra.mxu0 %v1346
    %1360 = vmatprep.subr.bf16.mxu0 0
    %1361 = vmatpush1.bf16.msra.mxu0 %v1345
    %1362 = vmatprep.subr.bf16.mxu0 0
    %1363 = vmatpush1.bf16.msra.mxu0 %v1344
    %1364 = vmatprep.subr.bf16.mxu0 0
    %1365 = vmatpush1.bf16.msra.mxu0 %v1343
    %1366 = vmatprep.subr.bf16.mxu0 0
    %1367 = vmatpush1.bf16.msra.mxu0 %v1342
    %1368 = vmatprep.subr.bf16.mxu0 0
    %1369 = vmatpush1.bf16.msra.mxu0 %v1341
    %1370 = vmatprep.subr.bf16.mxu0 0
    %1371 = vmatpush1.bf16.msra.mxu0 %v1340
    %1372 = vmatprep.subr.bf16.mxu0 0
    %1373 = vmatpush2.bf16.msra.mxu0 0
    %1374 = vmatprep.subr.bf16.mxu0 0
    %1375 = vmatpush2.bf16.msra.mxu0 0
    %1376 = vmatprep.subr.bf16.mxu0 0
    %1377 = vmatpush2.bf16.msra.mxu0 0
    %1378 = vmatprep.subr.bf16.mxu0 0
    %1379 = vmatpush2.bf16.msra.mxu0 0
    %1380 = vmatprep.subr.bf16.mxu0 0
    %1381 = vmatpush2.bf16.msra.mxu0 0
    %1382 = vmatprep.subr.bf16.mxu0 0
    %1383 = vmatpush2.bf16.msra.mxu0 0
    %1384 = vmatprep.subr.bf16.mxu0 0
    %1385 = vmatpush2.bf16.msra.mxu0 0
    %1386 = vmatprep.subr.bf16.mxu0 0
    %1387 = vmatpush2.bf16.msra.mxu0 0
    %1388 = vmatprep.mubr.bf16.mxu0 0
    %1389 = vmatmul.mubr.bf16.gmra.mxu0 %v1284
    %v1390 = vpop.f32.mrf.mxu0
    %v1391 = vadd.f32 %v1306, %v1390
    %v1392 = vpop.f32.mrf.mxu0
    %v1393 = vpop.f32.mrf.mxu0
    %v1394 = vpop.f32.mrf.mxu0
    %1395 = vdwg.mxu0
    %1396 = vst [vmem:[#allocation19] sm:$0x3] %v1391
    // Predicated region
    $region122: #{tpu_custom_call.1} parent=1 // pred_check
      _
    $region123: #{tpu_custom_call.1} parent=1 // pred_check_branch
      %1398 = sbr.rel (0) target = $region125
    $region124: #{tpu_custom_call.1} parent=1 // pred_region
      %s1400 = ssub.s32 32, 32
      %1401 = vsyncadd [#allocation4], %s1400
      %s1403 = sshll.u32 [#allocation19], 4
      %s1404 = int_to_ptr.vmem [resolvable:$true] %s1403
      %1406 = dma.vmem_to_hbm [thread:$0]  %s1404, 32, %s20, [#allocation4]
    $region125: #{tpu_custom_call.1} parent=1 // pred_fallthru
      _
    // Predicated region
    $region126: #{tpu_custom_call.1} parent=1 // pred_check
      _
    $region127: #{tpu_custom_call.1} parent=1 // pred_check_branch
      %1408 = sbr.rel (0) target = $region129
    $region128: #{tpu_custom_call.1} parent=1 // pred_region
      %1409 = dma.done [#allocation4], 32
    $region129: #{tpu_custom_call.1} parent=1 // pred_fallthru
      _
    %1410 = vsyncpa [#allocation3], 1
    %1411 = vsyncpa [#allocation6], 1
    %1412 = vsyncpa [#allocation9], 1
    %1413 = vsyncpa [#allocation12], 1
    %1414 = vsyncpa [#allocation15], 1
    %1415 = vsyncpa [#allocation18], 1
    %1416 = vsyncpa [#allocation4], 1

</llo_original>
